<compile_context>
chip_gen: v7x
topology: tpu7x:2x2x1
jax: 0.10.0
libtpu: 0.0.40
codegen_flags: <defaults>
</compile_context>

<pallas_src>
import math

import numpy as np
import jax
import jax.numpy as jnp
from jax.experimental import pallas as pl
from jax.experimental.pallas import tpu as pltpu


def _dw_conv_s2_kernel(w_sref, b_sref, x_ref, o_ref, halo_ref):
    """One (batch, channel, row-tile) step of the depthwise stride-2 conv.

    w_sref:   (C*9,) f32 SMEM  -- taps, row-major (kh, kw) per channel
    b_sref:   (C,)   f32 SMEM  -- bias per channel
    x_ref:    (TH, 2*W)        -- TH row-pairs: [row 2r | row 2r+1]
    o_ref:    (TH, OW)         -- output rows t*TH .. t*TH + TH - 1
    halo_ref: (1, W) f32 VMEM  -- last odd row of the previous row tile
    """
    TH, W2 = x_ref.shape
    W = W2 // 2
    OW = o_ref.shape[1]
    c = pl.program_id(1)
    t = pl.program_id(2)

    xb = x_ref[...].astype(jnp.float32)
    ev = xb[:, :W]                      # x[2r,   :]  (tap kh = 1)
    od = xb[:, W:]                      # x[2r+1, :]  (tap kh = 2)

    # Tap kh=0 needs x[2r-1, :]: shift `od` down one row; row 0 comes from the
    # previous row tile's halo (or the conv zero padding for the first tile).
    od_up = pltpu.roll(od, shift=1, axis=0)
    halo = jnp.where(t > 0, halo_ref[...], jnp.zeros((1, W), jnp.float32))
    rix = jax.lax.broadcasted_iota(jnp.int32, (TH, W), 0)
    od_up = jnp.where(rix == 0, halo, od_up)

    # Weight-carrying decimation matrices:
    #   m[w, j] = sum_kw tap[kh, kw] * (w == 2j + kw - 1)
    # so (plane @ m)[i, j] = sum_kw tap[kh, kw] * plane[i, 2j + kw - 1], with
    # the j=0 / kw=0 left-pad tap dropping out automatically (no match).
    iw = jax.lax.broadcasted_iota(jnp.int32, (W, OW), 0)
    ij = jax.lax.broadcasted_iota(jnp.int32, (W, OW), 1)

    acc = jnp.full((TH, OW), b_sref[c], dtype=jnp.float32)
    for kh, plane in enumerate((od_up, ev, od)):
        m = jnp.zeros((W, OW), jnp.float32)
        for kw in range(3):
            tap = w_sref[c * 9 + kh * 3 + kw]
            m = m + jnp.where(iw == 2 * ij + (kw - 1), tap, 0.0)
        acc = acc + jnp.dot(plane, m,
                            preferred_element_type=jnp.float32,
                            precision=jax.lax.Precision.HIGHEST)
    o_ref[...] = acc.astype(o_ref.dtype)

    # The next row tile's top halo is this tile's last odd row x[2*(t+1)*TH-1].
    halo_ref[...] = od[TH - 1:TH, :]


def _choose_row_tile(OH, W, row_tile):
    """TH is either the full OH (single tile) or a multiple of 8 output rows."""
    if row_tile is None:
        # target roughly a 1 MiB f32 input slab per step: TH * 2W * 4 bytes
        row_tile = (1 << 20) // max(1, 8 * W)
        row_tile = max(8, min(256, row_tile))
    row_tile = max(8, (row_tile // 8) * 8)
    if row_tile >= OH:
        return OH
    return row_tile


def depthwise_conv_stride2(x, w, bias, *, row_tile=None):
    """One Conv2d(C, C, 3, stride=2, padding=1, groups=C, bias=True) layer.

    x: (B, C, H, W)   w: (C, 3, 3)   bias: (C,)
    """
    B, C, H, W = x.shape
    # Odd spatial dims: one zero row / column appended bottom / right is
    # exactly equivalent to the conv's zero padding for stride-2, k=3.
    if H % 2 or W % 2:
        x = jnp.pad(x, ((0, 0), (0, 0), (0, H % 2), (0, W % 2)))
        B, C, H, W = x.shape
    OH, OW = H // 2, W // 2

    # Free metadata reshape: row r of xr holds input rows (2r, 2r+1) side by
    # side, giving both vertical parities without any HBM copies.
    xr = x.reshape(B, C, OH, 2 * W)

    TH = _choose_row_tile(OH, W, row_tile)
    n_t = pl.cdiv(OH, TH)

    w_flat = w.astype(jnp.float32).reshape(C * 9)
    b_flat = bias.astype(jnp.float32)

    grid_spec = pltpu.PrefetchScalarGridSpec(
        num_scalar_prefetch=2,
        grid=(B, C, n_t),
        in_specs=[
            pl.BlockSpec((pl.Squeezed(), pl.Squeezed(), TH, 2 * W),
                         lambda bb, cc, tt, *_: (bb, cc, tt, 0)),
        ],
        out_specs=pl.BlockSpec((pl.Squeezed(), pl.Squeezed(), TH, OW),
                               lambda bb, cc, tt, *_: (bb, cc, tt, 0)),
        scratch_shapes=[pltpu.VMEM((1, W), jnp.float32)],
    )

    return pl.pallas_call(
        _dw_conv_s2_kernel,
        out_shape=jax.ShapeDtypeStruct((B, C, OH, OW), x.dtype),
        grid_spec=grid_spec,
        compiler_params=pltpu.CompilerParams(
            # B and C shard across TensorCores; the row-tile axis carries the
            # 1-row halo in scratch, so it must stay sequential.
            dimension_semantics=("parallel", "parallel", "arbitrary"),
            vmem_limit_bytes=32 * 1024 * 1024,
        ),
    )(w_flat, b_flat, xr)


class Downsample:
    """JAX/Pallas equivalent of the PyTorch Downsample module."""

    def __init__(self, n_channels, ratio, key):
        self.ratio = ratio
        self.params = []
        n_layers = int(np.log2(ratio))
        # PyTorch Conv2d default init: U(-1/sqrt(fan_in), 1/sqrt(fan_in)),
        # fan_in = (in_channels / groups) * kH * kW = 9.
        bound = 1.0 / math.sqrt(9.0)
        for i in range(n_layers):
            kw_, kb_ = jax.random.split(jax.random.fold_in(key, i))
            wgt = jax.random.uniform(kw_, (n_channels, 3, 3), jnp.float32,
                                     -bound, bound)
            b = jax.random.uniform(kb_, (n_channels,), jnp.float32,
                                   -bound, bound)
            self.params.append((wgt, b))

    def __call__(self, x, *, row_tile=None):
        # TODO(synk): the log2(ratio) layers could be fused into a single
        # pallas_call so the 4x-smaller intermediate never leaves VMEM; kept
        # as separate calls (a ~10-20% effect per the review).
        h = x
        for wgt, b in self.params:
            h = depthwise_conv_stride2(h, wgt, b, row_tile=row_tile)
        return h


def _ref_forward(x, params):
    """Pure-JAX reference (lax conv) for correctness checking."""
    h = x
    for wgt, b in params:
        h = jax.lax.conv_general_dilated(
            h, wgt[:, None, :, :], window_strides=(2, 2),
            padding=((1, 1), (1, 1)),
            dimension_numbers=('NCHW', 'OIHW', 'NCHW'),
            feature_group_count=h.shape[1],
            precision=jax.lax.Precision.HIGHEST) + b[None, :, None, None]
    return h


if __name__ == "__main__":
    key = jax.random.PRNGKey(0)
    kx1, kp1, kx2, kp2 = jax.random.split(key, 4)

    # Config implied by the module: small NCHW batch, ratio=4 -> 2 conv layers.
    B, C, H, W, ratio = 2, 4, 16, 16, 4
    x = jax.random.normal(kx1, (B, C, H, W), jnp.float32)
    model = Downsample(C, ratio, kp1)
    y = jax.block_until_ready(model(x))
    assert y.shape == (B, C, H // ratio, W // ratio), y.shape
    np.testing.assert_allclose(np.asarray(y),
                               np.asarray(_ref_forward(x, model.params)),
                               rtol=1e-4, atol=1e-4)

    # Larger spatial size with an explicit small row tile so the multi-tile
    # (halo-carry) path is exercised as well.
    B2, C2, H2, W2, ratio2 = 1, 3, 64, 64, 2
    x2 = jax.random.normal(kx2, (B2, C2, H2, W2), jnp.float32)
    model2 = Downsample(C2, ratio2, kp2)
    y2 = jax.block_until_ready(model2(x2, row_tile=8))
    assert y2.shape == (B2, C2, H2 // ratio2, W2 // ratio2), y2.shape
    np.testing.assert_allclose(np.asarray(y2),
                               np.asarray(_ref_forward(x2, model2.params)),
                               rtol=1e-4, atol=1e-4)

    print("KERNEL_OK")
</pallas_src>

<mosaic_0001>
module attributes {stable_mosaic.version = 11 : i64} {
  func.func @_dw_conv_s2_kernel(%arg0: i32, %arg1: i32, %arg2: i32, %arg3: memref<36xf32, #tpu.memory_space<smem>>, %arg4: memref<4xf32, #tpu.memory_space<smem>>, %arg5: memref<1x1x8x32xf32, #tpu.memory_space<vmem>>, %arg6: memref<1x1x8x8xf32, #tpu.memory_space<vmem>>, %arg7: memref<1x16xf32, #tpu.memory_space<vmem>>) attributes {dimension_semantics = [#tpu.dimension_semantics<parallel>, #tpu.dimension_semantics<parallel>, #tpu.dimension_semantics<arbitrary>], iteration_bounds = array<i64: 2, 4, 1>, scalar_prefetch = 2 : i64, scratch_operands = 1 : i64, tpu.core_type = #tpu.core_type<tc>, window_params = [{transform_indices = @transform_0, window_bounds = array<i64: 1, 1, 8, 32>}, {transform_indices = @transform_1, window_bounds = array<i64: 1, 1, 8, 8>}]} {
    %c0 = arith.constant 0 : index
    %c0_0 = arith.constant 0 : index
    %c0_1 = arith.constant 0 : index
    %c0_2 = arith.constant 0 : index
    %0 = vector.load %arg5[%c0, %c0_0, %c0_1, %c0_2] : memref<1x1x8x32xf32, #tpu.memory_space<vmem>>, vector<1x1x8x32xf32>
    %1 = vector.shape_cast %0 : vector<1x1x8x32xf32> to vector<8x32xf32>
    %2 = vector.extract_strided_slice %1 {offsets = [0, 0], sizes = [8, 16], strides = [1, 1]} : vector<8x32xf32> to vector<8x16xf32>
    %3 = vector.extract_strided_slice %1 {offsets = [0, 16], sizes = [8, 16], strides = [1, 1]} : vector<8x32xf32> to vector<8x16xf32>
    %c1_i32 = arith.constant 1 : i32
    %4 = tpu.dynamic_rotate %3 by %c1_i32 dim 0 : vector<8x16xf32>, i32 -> vector<8x16xf32>
    %c0_i32 = arith.constant 0 : i32
    %5 = arith.cmpi sgt, %arg2, %c0_i32 : i32
    %c0_3 = arith.constant 0 : index
    %c0_4 = arith.constant 0 : index
    %6 = vector.load %arg7[%c0_3, %c0_4] : memref<1x16xf32, #tpu.memory_space<vmem>>, vector<1x16xf32>
    %cst = arith.constant 0.000000e+00 : f32
    %7 = vector.broadcast %cst : f32 to vector<1x16xf32>
    %8 = arith.select %5, %6, %7 : vector<1x16xf32>
    %9 = tpu.iota {dimensions = array<i32: 0>} : vector<8x16xi32>
    %c0_i32_5 = arith.constant 0 : i32
    %10 = vector.broadcast %c0_i32_5 : i32 to vector<8x16xi32>
    %11 = arith.cmpi eq, %9, %10 : vector<8x16xi32>
    %12 = vector.shape_cast %8 : vector<1x16xf32> to vector<1x16xf32>
    %13 = vector.broadcast %12 : vector<1x16xf32> to vector<8x16xf32>
    %14 = arith.select %11, %13, %4 : vector<8x16xi1>, vector<8x16xf32>
    %15 = tpu.iota {dimensions = array<i32: 0>} : vector<16x8xi32>
    %16 = tpu.iota {dimensions = array<i32: 1>} : vector<16x8xi32>
    %17 = arith.index_cast %arg1 : i32 to index
    %18 = memref.load %arg4[%17] : memref<4xf32, #tpu.memory_space<smem>>
    %19 = vector.broadcast %18 : f32 to vector<8x8xf32>
    %cst_6 = arith.constant 0.000000e+00 : f32
    %20 = vector.broadcast %cst_6 : f32 to vector<16x8xf32>
    %c9_i32 = arith.constant 9 : i32
    %21 = arith.muli %arg1, %c9_i32 : i32
    %c0_i32_7 = arith.constant 0 : i32
    %22 = arith.addi %21, %c0_i32_7 : i32
    %c0_i32_8 = arith.constant 0 : i32
    %23 = arith.addi %22, %c0_i32_8 : i32
    %24 = arith.index_cast %23 : i32 to index
    %25 = memref.load %arg3[%24] : memref<36xf32, #tpu.memory_space<smem>>
    %c2_i32 = arith.constant 2 : i32
    %26 = vector.broadcast %c2_i32 : i32 to vector<16x8xi32>
    %27 = arith.muli %26, %16 : vector<16x8xi32>
    %c-1_i32 = arith.constant -1 : i32
    %28 = vector.broadcast %c-1_i32 : i32 to vector<16x8xi32>
    %29 = arith.addi %27, %28 : vector<16x8xi32>
    %30 = arith.cmpi eq, %15, %29 : vector<16x8xi32>
    %cst_9 = arith.constant 0.000000e+00 : f32
    %31 = vector.broadcast %25 : f32 to vector<16x8xf32>
    %32 = vector.broadcast %cst_9 : f32 to vector<16x8xf32>
    %33 = arith.select %30, %31, %32 : vector<16x8xi1>, vector<16x8xf32>
    %34 = arith.addf %20, %33 : vector<16x8xf32>
    %c9_i32_10 = arith.constant 9 : i32
    %35 = arith.muli %arg1, %c9_i32_10 : i32
    %c0_i32_11 = arith.constant 0 : i32
    %36 = arith.addi %35, %c0_i32_11 : i32
    %c1_i32_12 = arith.constant 1 : i32
    %37 = arith.addi %36, %c1_i32_12 : i32
    %38 = arith.index_cast %37 : i32 to index
    %39 = memref.load %arg3[%38] : memref<36xf32, #tpu.memory_space<smem>>
    %c2_i32_13 = arith.constant 2 : i32
    %40 = vector.broadcast %c2_i32_13 : i32 to vector<16x8xi32>
    %41 = arith.muli %40, %16 : vector<16x8xi32>
    %c0_i32_14 = arith.constant 0 : i32
    %42 = vector.broadcast %c0_i32_14 : i32 to vector<16x8xi32>
    %43 = arith.addi %41, %42 : vector<16x8xi32>
    %44 = arith.cmpi eq, %15, %43 : vector<16x8xi32>
    %cst_15 = arith.constant 0.000000e+00 : f32
    %45 = vector.broadcast %39 : f32 to vector<16x8xf32>
    %46 = vector.broadcast %cst_15 : f32 to vector<16x8xf32>
    %47 = arith.select %44, %45, %46 : vector<16x8xi1>, vector<16x8xf32>
    %48 = arith.addf %34, %47 : vector<16x8xf32>
    %c9_i32_16 = arith.constant 9 : i32
    %49 = arith.muli %arg1, %c9_i32_16 : i32
    %c0_i32_17 = arith.constant 0 : i32
    %50 = arith.addi %49, %c0_i32_17 : i32
    %c2_i32_18 = arith.constant 2 : i32
    %51 = arith.addi %50, %c2_i32_18 : i32
    %52 = arith.index_cast %51 : i32 to index
    %53 = memref.load %arg3[%52] : memref<36xf32, #tpu.memory_space<smem>>
    %c2_i32_19 = arith.constant 2 : i32
    %54 = vector.broadcast %c2_i32_19 : i32 to vector<16x8xi32>
    %55 = arith.muli %54, %16 : vector<16x8xi32>
    %c1_i32_20 = arith.constant 1 : i32
    %56 = vector.broadcast %c1_i32_20 : i32 to vector<16x8xi32>
    %57 = arith.addi %55, %56 : vector<16x8xi32>
    %58 = arith.cmpi eq, %15, %57 : vector<16x8xi32>
    %cst_21 = arith.constant 0.000000e+00 : f32
    %59 = vector.broadcast %53 : f32 to vector<16x8xf32>
    %60 = vector.broadcast %cst_21 : f32 to vector<16x8xf32>
    %61 = arith.select %58, %59, %60 : vector<16x8xi1>, vector<16x8xf32>
    %62 = arith.addf %48, %61 : vector<16x8xf32>
    %cst_22 = arith.constant dense<0.000000e+00> : vector<8x8xf32>
    %63 = tpu.matmul %14, %62, %cst_22 {dimension_numbers = #tpu.dot_dimension_numbers<[1], [0], [0], [1], [0, 0, 1, 1], [], []>, precision = #tpu.contract_precision<fp32>} : vector<8x16xf32>, vector<16x8xf32>, vector<8x8xf32> -> vector<8x8xf32>
    %64 = arith.addf %19, %63 : vector<8x8xf32>
    %cst_23 = arith.constant 0.000000e+00 : f32
    %65 = vector.broadcast %cst_23 : f32 to vector<16x8xf32>
    %c9_i32_24 = arith.constant 9 : i32
    %66 = arith.muli %arg1, %c9_i32_24 : i32
    %c3_i32 = arith.constant 3 : i32
    %67 = arith.addi %66, %c3_i32 : i32
    %c0_i32_25 = arith.constant 0 : i32
    %68 = arith.addi %67, %c0_i32_25 : i32
    %69 = arith.index_cast %68 : i32 to index
    %70 = memref.load %arg3[%69] : memref<36xf32, #tpu.memory_space<smem>>
    %c2_i32_26 = arith.constant 2 : i32
    %71 = vector.broadcast %c2_i32_26 : i32 to vector<16x8xi32>
    %72 = arith.muli %71, %16 : vector<16x8xi32>
    %c-1_i32_27 = arith.constant -1 : i32
    %73 = vector.broadcast %c-1_i32_27 : i32 to vector<16x8xi32>
    %74 = arith.addi %72, %73 : vector<16x8xi32>
    %75 = arith.cmpi eq, %15, %74 : vector<16x8xi32>
    %cst_28 = arith.constant 0.000000e+00 : f32
    %76 = vector.broadcast %70 : f32 to vector<16x8xf32>
    %77 = vector.broadcast %cst_28 : f32 to vector<16x8xf32>
    %78 = arith.select %75, %76, %77 : vector<16x8xi1>, vector<16x8xf32>
    %79 = arith.addf %65, %78 : vector<16x8xf32>
    %c9_i32_29 = arith.constant 9 : i32
    %80 = arith.muli %arg1, %c9_i32_29 : i32
    %c3_i32_30 = arith.constant 3 : i32
    %81 = arith.addi %80, %c3_i32_30 : i32
    %c1_i32_31 = arith.constant 1 : i32
    %82 = arith.addi %81, %c1_i32_31 : i32
    %83 = arith.index_cast %82 : i32 to index
    %84 = memref.load %arg3[%83] : memref<36xf32, #tpu.memory_space<smem>>
    %c2_i32_32 = arith.constant 2 : i32
    %85 = vector.broadcast %c2_i32_32 : i32 to vector<16x8xi32>
    %86 = arith.muli %85, %16 : vector<16x8xi32>
    %c0_i32_33 = arith.constant 0 : i32
    %87 = vector.broadcast %c0_i32_33 : i32 to vector<16x8xi32>
    %88 = arith.addi %86, %87 : vector<16x8xi32>
    %89 = arith.cmpi eq, %15, %88 : vector<16x8xi32>
    %cst_34 = arith.constant 0.000000e+00 : f32
    %90 = vector.broadcast %84 : f32 to vector<16x8xf32>
    %91 = vector.broadcast %cst_34 : f32 to vector<16x8xf32>
    %92 = arith.select %89, %90, %91 : vector<16x8xi1>, vector<16x8xf32>
    %93 = arith.addf %79, %92 : vector<16x8xf32>
    %c9_i32_35 = arith.constant 9 : i32
    %94 = arith.muli %arg1, %c9_i32_35 : i32
    %c3_i32_36 = arith.constant 3 : i32
    %95 = arith.addi %94, %c3_i32_36 : i32
    %c2_i32_37 = arith.constant 2 : i32
    %96 = arith.addi %95, %c2_i32_37 : i32
    %97 = arith.index_cast %96 : i32 to index
    %98 = memref.load %arg3[%97] : memref<36xf32, #tpu.memory_space<smem>>
    %c2_i32_38 = arith.constant 2 : i32
    %99 = vector.broadcast %c2_i32_38 : i32 to vector<16x8xi32>
    %100 = arith.muli %99, %16 : vector<16x8xi32>
    %c1_i32_39 = arith.constant 1 : i32
    %101 = vector.broadcast %c1_i32_39 : i32 to vector<16x8xi32>
    %102 = arith.addi %100, %101 : vector<16x8xi32>
    %103 = arith.cmpi eq, %15, %102 : vector<16x8xi32>
    %cst_40 = arith.constant 0.000000e+00 : f32
    %104 = vector.broadcast %98 : f32 to vector<16x8xf32>
    %105 = vector.broadcast %cst_40 : f32 to vector<16x8xf32>
    %106 = arith.select %103, %104, %105 : vector<16x8xi1>, vector<16x8xf32>
    %107 = arith.addf %93, %106 : vector<16x8xf32>
    %cst_41 = arith.constant dense<0.000000e+00> : vector<8x8xf32>
    %108 = tpu.matmul %2, %107, %cst_41 {dimension_numbers = #tpu.dot_dimension_numbers<[1], [0], [0], [1], [0, 0, 1, 1], [], []>, precision = #tpu.contract_precision<fp32>} : vector<8x16xf32>, vector<16x8xf32>, vector<8x8xf32> -> vector<8x8xf32>
    %109 = arith.addf %64, %108 : vector<8x8xf32>
    %cst_42 = arith.constant 0.000000e+00 : f32
    %110 = vector.broadcast %cst_42 : f32 to vector<16x8xf32>
    %c9_i32_43 = arith.constant 9 : i32
    %111 = arith.muli %arg1, %c9_i32_43 : i32
    %c6_i32 = arith.constant 6 : i32
    %112 = arith.addi %111, %c6_i32 : i32
    %c0_i32_44 = arith.constant 0 : i32
    %113 = arith.addi %112, %c0_i32_44 : i32
    %114 = arith.index_cast %113 : i32 to index
    %115 = memref.load %arg3[%114] : memref<36xf32, #tpu.memory_space<smem>>
    %c2_i32_45 = arith.constant 2 : i32
    %116 = vector.broadcast %c2_i32_45 : i32 to vector<16x8xi32>
    %117 = arith.muli %116, %16 : vector<16x8xi32>
    %c-1_i32_46 = arith.constant -1 : i32
    %118 = vector.broadcast %c-1_i32_46 : i32 to vector<16x8xi32>
    %119 = arith.addi %117, %118 : vector<16x8xi32>
    %120 = arith.cmpi eq, %15, %119 : vector<16x8xi32>
    %cst_47 = arith.constant 0.000000e+00 : f32
    %121 = vector.broadcast %115 : f32 to vector<16x8xf32>
    %122 = vector.broadcast %cst_47 : f32 to vector<16x8xf32>
    %123 = arith.select %120, %121, %122 : vector<16x8xi1>, vector<16x8xf32>
    %124 = arith.addf %110, %123 : vector<16x8xf32>
    %c9_i32_48 = arith.constant 9 : i32
    %125 = arith.muli %arg1, %c9_i32_48 : i32
    %c6_i32_49 = arith.constant 6 : i32
    %126 = arith.addi %125, %c6_i32_49 : i32
    %c1_i32_50 = arith.constant 1 : i32
    %127 = arith.addi %126, %c1_i32_50 : i32
    %128 = arith.index_cast %127 : i32 to index
    %129 = memref.load %arg3[%128] : memref<36xf32, #tpu.memory_space<smem>>
    %c2_i32_51 = arith.constant 2 : i32
    %130 = vector.broadcast %c2_i32_51 : i32 to vector<16x8xi32>
    %131 = arith.muli %130, %16 : vector<16x8xi32>
    %c0_i32_52 = arith.constant 0 : i32
    %132 = vector.broadcast %c0_i32_52 : i32 to vector<16x8xi32>
    %133 = arith.addi %131, %132 : vector<16x8xi32>
    %134 = arith.cmpi eq, %15, %133 : vector<16x8xi32>
    %cst_53 = arith.constant 0.000000e+00 : f32
    %135 = vector.broadcast %129 : f32 to vector<16x8xf32>
    %136 = vector.broadcast %cst_53 : f32 to vector<16x8xf32>
    %137 = arith.select %134, %135, %136 : vector<16x8xi1>, vector<16x8xf32>
    %138 = arith.addf %124, %137 : vector<16x8xf32>
    %c9_i32_54 = arith.constant 9 : i32
    %139 = arith.muli %arg1, %c9_i32_54 : i32
    %c6_i32_55 = arith.constant 6 : i32
    %140 = arith.addi %139, %c6_i32_55 : i32
    %c2_i32_56 = arith.constant 2 : i32
    %141 = arith.addi %140, %c2_i32_56 : i32
    %142 = arith.index_cast %141 : i32 to index
    %143 = memref.load %arg3[%142] : memref<36xf32, #tpu.memory_space<smem>>
    %c2_i32_57 = arith.constant 2 : i32
    %144 = vector.broadcast %c2_i32_57 : i32 to vector<16x8xi32>
    %145 = arith.muli %144, %16 : vector<16x8xi32>
    %c1_i32_58 = arith.constant 1 : i32
    %146 = vector.broadcast %c1_i32_58 : i32 to vector<16x8xi32>
    %147 = arith.addi %145, %146 : vector<16x8xi32>
    %148 = arith.cmpi eq, %15, %147 : vector<16x8xi32>
    %cst_59 = arith.constant 0.000000e+00 : f32
    %149 = vector.broadcast %143 : f32 to vector<16x8xf32>
    %150 = vector.broadcast %cst_59 : f32 to vector<16x8xf32>
    %151 = arith.select %148, %149, %150 : vector<16x8xi1>, vector<16x8xf32>
    %152 = arith.addf %138, %151 : vector<16x8xf32>
    %cst_60 = arith.constant dense<0.000000e+00> : vector<8x8xf32>
    %153 = tpu.matmul %3, %152, %cst_60 {dimension_numbers = #tpu.dot_dimension_numbers<[1], [0], [0], [1], [0, 0, 1, 1], [], []>, precision = #tpu.contract_precision<fp32>} : vector<8x16xf32>, vector<16x8xf32>, vector<8x8xf32> -> vector<8x8xf32>
    %154 = arith.addf %109, %153 : vector<8x8xf32>
    %c0_61 = arith.constant 0 : index
    %c0_62 = arith.constant 0 : index
    %c0_63 = arith.constant 0 : index
    %c0_64 = arith.constant 0 : index
    %155 = vector.load %arg6[%c0_61, %c0_62, %c0_63, %c0_64] : memref<1x1x8x8xf32, #tpu.memory_space<vmem>>, vector<1x1x8x8xf32>
    %156 = vector.shape_cast %155 : vector<1x1x8x8xf32> to vector<8x8xf32>
    %157 = vector.shape_cast %154 : vector<8x8xf32> to vector<1x1x8x8xf32>
    tpu.vector_store %arg6[%c0_61, %c0_62, %c0_63, %c0_64], %157 {strides = array<i32>} : memref<1x1x8x8xf32, #tpu.memory_space<vmem>>, vector<1x1x8x8xf32>,
    %158 = vector.extract_strided_slice %3 {offsets = [7, 0], sizes = [1, 16], strides = [1, 1]} : vector<8x16xf32> to vector<1x16xf32>
    %c0_65 = arith.constant 0 : index
    %c0_66 = arith.constant 0 : index
    %159 = vector.load %arg7[%c0_65, %c0_66] : memref<1x16xf32, #tpu.memory_space<vmem>>, vector<1x16xf32>
    tpu.vector_store %arg7[%c0_65, %c0_66], %158 {strides = array<i32>} : memref<1x16xf32, #tpu.memory_space<vmem>>, vector<1x16xf32>,
    return
  }
  func.func @transform_0(%arg0: i32, %arg1: i32, %arg2: i32, %arg3: memref<36xf32, #tpu.memory_space<smem>>, %arg4: memref<4xf32, #tpu.memory_space<smem>>) -> (i32, i32, i32, i32) {
    %c0_i32 = arith.constant 0 : i32
    %c0_i32_0 = arith.constant 0 : i32
    return %arg0, %arg1, %arg2, %c0_i32 : i32, i32, i32, i32
  }
  func.func @transform_1(%arg0: i32, %arg1: i32, %arg2: i32, %arg3: memref<36xf32, #tpu.memory_space<smem>>, %arg4: memref<4xf32, #tpu.memory_space<smem>>) -> (i32, i32, i32, i32) {
    %c0_i32 = arith.constant 0 : i32
    %c0_i32_0 = arith.constant 0 : i32
    return %arg0, %arg1, %arg2, %c0_i32 : i32, i32, i32, i32
  }
}

</mosaic_0001>

<llo_original>
// kernel: tpu_custom_call.1
$region0: #{tpu_custom_call.1}
  #allocation0 [shape = 'u32[]', space=smem, size = 0x4, offset = 0x4, fixed_abs, tag = 'smem constant byte address 0x4 - core index']
  #allocation1 [shape = 'u32[144,128]{1,0:T(1,128)}', space=vmem, size = 0x12000, scoped, tag = 'internal scratch']
  #allocation2 [shape = 'f32[1,16]{1,0:T(1,128)}', space=vmem, size = 0x200, scoped, tag = 'scratch operand']
  #allocation3 [shape = 's32[1]{0}', space=sflag, size = 0x4, scoped, tag = 'scoped memory for tpu_custom_call.1']
  #allocation4 [shape = 'u8[512]{0}', space=smem, size = 0x200, scoped, tag = 'prefetched SMEM operand 0']
  #allocation5 [shape = 'u8[512]{0}', space=smem, size = 0x200, scoped, tag = 'prefetched SMEM operand 1']
  %s0 = inlined_call_operand.hbm [shape: f32[36], index: 0, kind: input, shape index: {}]
  %s1 = inlined_call_operand.vmem [shape: f32[4], index: 1, kind: input, shape index: {}]
  %s2 = inlined_call_operand.hbm [shape: f32[2,4,8,32], index: 2, kind: input, shape index: {}]
  %s3 = inlined_call_operand.hbm [shape: f32[2,4,8,8], index: 3, kind: output, shape index: {}]
  %s4 = sld [smem:[#allocation0]]
  $region41: #{tpu_custom_call.1} parent=0
    _
  %s6 = ssub.s32 1, %s4
  %s7 = scalar_select 0, %s6, %s4
  %9 = dma.hbm_to_smem %s0, 16, [#allocation4], [#allocation3]
  %s10 = sshll.u32 %s1, 4
  %s11 = int_to_ptr.vmem [resolvable:$true] %s10
  %13 = dma.vmem_to_smem %s11, 16, [#allocation5], [#allocation3]
  %14 = dma.done [#allocation3], 32
  %15 = sfence
  $region1: #{tpu_custom_call.1} parent=0
    #allocation6 [shape = 'u8[8192]{0}', space=vmem, size = 0x2000, scoped, tag = 'input window, operand 2']
    #allocation7 [shape = 's32[2]{0}', space=sflag, size = 0x8, scoped, tag = 'scoped memory for tpu_custom_call.1']
    #allocation8 [shape = 's32[2]{0}', space=sflag, size = 0x8, scoped, tag = 'scoped memory for tpu_custom_call.1']
    #allocation9 [shape = 'u8[8192]{0}', space=vmem, size = 0x2000, scoped, tag = 'output window, operand 0']
    %16 = vsyncpa [#allocation7], 0
    %s17 = scalar_lea.sflag [#allocation7], 1
    %18 = vsyncpa %s17, 0
    %19 = vsyncpa [#allocation8], 0
    %s20 = scalar_lea.sflag [#allocation8], 1
    %21 = vsyncpa %s20, 0
    loop: start=0, step=1, limit=10
    $region2: #{tpu_custom_call.1} parent=1 // loop_pre_header
      _
    $region3: #{tpu_custom_call.1} parent=1 // loop_header
      %s23 = sphi 0, %s27
      %p24 = scmp.ge.s32.totalorder %s23, 10
      %s30 = sphi 0, %s49
      %s31 = sphi 0, %s45
      %s32 = sphi 0, %s41
      %s33 = sphi 0, %s30
      %s34 = sphi 0, %s31
      %s35 = sphi 0, %s32
      %s36 = sphi 0, %s33
      %s37 = sphi 0, %s34
      %s38 = sphi 0, %s35
      %s56 = sphi 0, %s58
      %s59 = sphi 0, %s56
      %s60 = sphi 0, %s59
      %s76 = sphi 0, %s60
      %s86 = sphi 0, %s88
      %s89 = sphi 0, %s86
      %s90 = sphi 0, %s89
      %s106 = sphi 0, %s90
    $region4: #{tpu_custom_call.1} parent=1 // loop_header_branch
      %26 = sbr.rel (%p24) target = $region8
    $region5: #{tpu_custom_call.1} parent=1 // loop_body
      %s28 = ssub.s32 %s23, 1
      %s29 = ssub.s32 %s23, 2
      %s39 = sadd.s32 1, %s32
      %p40 = scmp.ge.s32.totalorder %s39, 1
      %s41 = scalar_select %p40, 0, %s39
      %s42 = sadd.s32 1, %s31
      %s43 = scalar_select %p40, %s42, %s31
      %p44 = scmp.ge.s32.totalorder %s43, 4
      %s45 = scalar_select %p44, 0, %s43
      %s46 = sadd.s32 1, %s30
      %s47 = scalar_select %p44, %s46, %s30
      %p48 = scmp.ge.s32.totalorder %s47, 2
      %s49 = scalar_select %p48, 0, %s47
      %s50 = ssub.s32 %s30, %s49
      %s51 = ssub.s32 %s31, %s45
      %s52 = sor.u32 %s50, %s51
      %s53 = ssub.s32 %s32, %s41
      %s54 = sor.u32 %s52, %s53
      %p55 = scmp.eq.s32.totalorder %s54, 0
      %s57 = sadd.s32 %s56, 1
      %s58 = scalar_select %p55, %s56, %s57
      %p61 = pneg %p55
      %p62 = scmp.eq.s32.totalorder %s23, 7
      %p63 = por %p61, %p62
      %p64 = scmp.ne.s32.totalorder %s56, %s59
      %p65 = scmp.eq.s32.totalorder %s23, 0
      %p66 = por %p64, %p65
      %p67 = scmp.ne.s32.totalorder %s56, %s59
      %p68 = scmp.eq.s32.totalorder %s28, 7
      %p69 = por %p67, %p68
      %p70 = scmp.ne.s32.totalorder %s59, %s60
      %p71 = scmp.eq.s32.totalorder %s28, 0
      %p72 = por %p70, %p71
      %p73 = scmp.ne.s32.totalorder %s59, %s60
      %p74 = scmp.eq.s32.totalorder %s29, 7
      %p75 = por %p73, %p74
      %p77 = scmp.ne.s32.totalorder %s60, %s76
      %p78 = scmp.eq.s32.totalorder %s29, 0
      %p79 = por %p77, %p78
      %s80 = ssub.s32 %s30, %s49
      %s81 = ssub.s32 %s31, %s45
      %s82 = sor.u32 %s80, %s81
      %s83 = ssub.s32 %s32, %s41
      %s84 = sor.u32 %s82, %s83
      %p85 = scmp.eq.s32.totalorder %s84, 0
      %s87 = sadd.s32 %s86, 1
      %s88 = scalar_select %p85, %s86, %s87
      %p91 = pneg %p85
      %p92 = scmp.eq.s32.totalorder %s23, 7
      %p93 = por %p91, %p92
      %p94 = scmp.ne.s32.totalorder %s86, %s89
      %p95 = scmp.eq.s32.totalorder %s23, 0
      %p96 = por %p94, %p95
      %p97 = scmp.ne.s32.totalorder %s86, %s89
      %p98 = scmp.eq.s32.totalorder %s28, 7
      %p99 = por %p97, %p98
      %p100 = scmp.ne.s32.totalorder %s89, %s90
      %p101 = scmp.eq.s32.totalorder %s28, 0
      %p102 = por %p100, %p101
      %p103 = scmp.ne.s32.totalorder %s89, %s90
      %p104 = scmp.eq.s32.totalorder %s29, 7
      %p105 = por %p103, %p104
      %p107 = scmp.ne.s32.totalorder %s90, %s106
      %p108 = scmp.eq.s32.totalorder %s29, 0
      %p109 = por %p107, %p108
      %p110 = scmp.le.s32.totalorder 1, %s23
      %p111 = scmp.lt.s32.totalorder %s23, 9
      %p112 = pnand %p110, %p111
      %p113 = pneg %p112
      // Predicated region
      $region9: #{tpu_custom_call.1} parent=5 // pred_check
        _
      $region10: #{tpu_custom_call.1} parent=5 // pred_check_branch
        %115 = sbr.rel (%p112) target = $region12
      $region11: #{tpu_custom_call.1} parent=5 // pred_region
        %s116 = ssub.s32 %s23, 1
      $region12: #{tpu_custom_call.1} parent=5 // pred_fallthru
        _
      %p117 = scmp.lt.s32.totalorder %s23, 8
      // Predicated region
      $region13: #{tpu_custom_call.1} parent=5 // pred_check
        %p118 = pneg %p117
      $region14: #{tpu_custom_call.1} parent=5 // pred_check_branch
        %120 = sbr.rel (%p118) target = $region16
      $region15: #{tpu_custom_call.1} parent=5 // pred_region
        // Predicated region
        $region17: #{tpu_custom_call.1} parent=15 // pred_check
          %p121 = pneg %p66
        $region18: #{tpu_custom_call.1} parent=15 // pred_check_branch
          %123 = sbr.rel (%p121) target = $region20
        $region19: #{tpu_custom_call.1} parent=15 // pred_region
          %s124 = sand.u32 %s56, 1
          %s125 = scalar_lea.sflag [#allocation7], %s124
          %s126 = sand.u32 %s56, 1
          %s127 = smul.addr %s126, 8
          %s128 = scalar_lea.vmem [#allocation6], %s127
          %s130 = ssub.s32 128, 128
          %131 = vsyncadd %s125, %s130
          %s132 = sadd.s32 %s32, %s31
          %s133 = smul.addr %s30, 4
          %s134 = sadd.s32 %s132, %s133
          %s135 = smul.addr %s134, 128
          %s136 = scalar_lea.hbm %s2, %s135
          %s138 = sshll.u32 %s128, 4
          %s139 = int_to_ptr.vmem [resolvable:$true] %s138
          %141 = dma.hbm_to_vmem [thread:$0]  %s136, 128, %s139, %s125
        $region20: #{tpu_custom_call.1} parent=15 // pred_fallthru
          _
      $region16: #{tpu_custom_call.1} parent=5 // pred_fallthru
        _
      %p142 = scmp.le.s32.totalorder 1, %s23
      %p143 = scmp.lt.s32.totalorder %s23, 9
      %p144 = pnand %p142, %p143
      %p145 = pneg %p144
      // Predicated region
      $region21: #{tpu_custom_call.1} parent=5 // pred_check
        _
      $region22: #{tpu_custom_call.1} parent=5 // pred_check_branch
        %147 = sbr.rel (%p144) target = $region24
      $region23: #{tpu_custom_call.1} parent=5 // pred_region
        %s148 = ssub.s32 %s23, 1
        %s149 = sand.u32 %s59, 1
        %s150 = scalar_lea.sflag [#allocation7], %s149
        %s151 = sand.u32 %s59, 1
        %s152 = smul.addr %s151, 8
        %s153 = scalar_lea.vmem [#allocation6], %s152
        // Predicated region
        $region25: #{tpu_custom_call.1} parent=23 // pred_check
          %p154 = pneg %p72
        $region26: #{tpu_custom_call.1} parent=23 // pred_check_branch
          %156 = sbr.rel (%p154) target = $region28
        $region27: #{tpu_custom_call.1} parent=23 // pred_region
          %157 = dma.done %s150, 128
        $region28: #{tpu_custom_call.1} parent=23 // pred_fallthru
          _
        %s158 = sand.u32 %s59, 1
        %s159 = scalar_lea.sflag [#allocation7], %s158
        %s160 = sand.u32 %s59, 1
        %s161 = smul.addr %s160, 8
        %s162 = scalar_lea.vmem [#allocation6], %s161
        %p163 = pneg %p72
        %p164 = pneg %p69
        %p165 = pneg %p102
        %p166 = pneg %p99
        %s167 = sand.u32 %s89, 1
        %s168 = scalar_lea.sflag [#allocation8], %s167
        %s169 = sand.u32 %s89, 1
        %s170 = smul.addr %s169, 8
        %s171 = scalar_lea.vmem [#allocation9], %s170
        %v172 = vld [vmem:[%s153] sm:$0xff]
        %174 = vrot.lane.b32.xlu0 %v172, 112
        %v175 = vpop.permute.xlu0 %174
        %v177 = vrot.slane %v175, 7
        %p178 = scmp.gt.s32.totalorder %s35, 0
        %v179 = vld [vmem:[#allocation2] sm:$0x1]
        %s180 = scalar_select %p178, 1, 0
        %v181 = vstv %s180
        %vm182 = vcmp.eq.s32.totalorder %v181, 1
        %v183 = vsel %vm182, %v179, 0.0
        %v184 = vlaneseq
        %v185 = vshrl.u32 %v184, 7
        %vm186 = vcmp.eq.s32.totalorder %v185, 0
        %v188 = vlaneseq
        %v189 = vshrl.u32 %v188, 7
        %v190 = vsub.s32 0, %v189
        %v191 = vrot.slane %v183, %v190
        %v193 = vsel %vm186, %v191, %v177
        %v194 = vadd.s32 %v185, 8
        %v195 = vlaneseq
        %v196 = vand.u32 %v195, 127
        %s197 = sld [smem:[#allocation5 + %s34]]
        %v198 = vstv %s197
        %s199 = smul.u32 %s34, 9
        %s200 = sld [smem:[#allocation4 + %s199]]
        %v201 = vmul.u32 %v196, 2
        %v202 = vadd.s32 %v201, 4294967295
        %vm203 = vcmp.eq.s32.totalorder %v185, %v202
        %vm204 = vcmp.eq.s32.totalorder %v194, %v202
        %v205 = vstv %s200
        %v206 = vsel %vm203, %v205, 0.0
        %v207 = vsel %vm204, %v205, 0.0
        %v208 = vadd.f32 %v206, 0.0
        %v209 = vadd.f32 %v207, 0.0
        %s210 = sadd.s32 %s199, 1
        %s211 = sld [smem:[#allocation4 + %s210]]
        %vm212 = vcmp.eq.s32.totalorder %v185, %v201
        %vm213 = vcmp.eq.s32.totalorder %v194, %v201
        %v214 = vstv %s211
        %v215 = vsel %vm212, %v214, 0.0
        %v216 = vsel %vm213, %v214, 0.0
        %v217 = vadd.f32 %v208, %v215
        %v218 = vadd.f32 %v209, %v216
        %s219 = sadd.s32 %s199, 2
        %s220 = sld [smem:[#allocation4 + %s219]]
        %v221 = vadd.s32 %v201, 1
        %vm222 = vcmp.eq.s32.totalorder %v185, %v221
        %vm223 = vcmp.eq.s32.totalorder %v194, %v221
        %v224 = vstv %s220
        %v225 = vsel %vm222, %v224, 0.0
        %v226 = vsel %vm223, %v224, 0.0
        %v227 = vadd.f32 %v217, %v225
        %v228 = vadd.f32 %v218, %v226
        %vm229 = vcmask 130048
        %v231 = vsel %vm229, %v193, 0
        %233 = vmatprep.subr.mxu0 0.0
        %v234 = vand.u32 %v227, 4294901760
        %235 = vmatpush1.msra.mxu0 %v234
        %236 = vmatprep.subr.mxu0 0.0
        %v237 = vand.u32 %v228, 4294901760
        %238 = vmatpush1.msra.mxu0 %v237
        %239 = vmatprep.subr.mxu0 0.0
        %240 = vmatpush1.msra.mxu0 0.0
        %241 = vmatprep.subr.mxu0 0.0
        %242 = vmatpush1.msra.mxu0 0.0
        %243 = vmatprep.subr.mxu0 0.0
        %244 = vmatpush1.msra.mxu0 0.0
        %245 = vmatprep.subr.mxu0 0.0
        %246 = vmatpush1.msra.mxu0 0.0
        %247 = vmatprep.subr.mxu0 0.0
        %248 = vmatpush1.msra.mxu0 0.0
        %249 = vmatprep.subr.mxu0 0.0
        %250 = vmatpush1.msra.mxu0 0.0
        %251 = vmatprep.subr.mxu0 0.0
        %252 = vmatpush1.msra.mxu0 0.0
        %253 = vmatprep.subr.mxu0 0.0
        %254 = vmatpush1.msra.mxu0 0.0
        %255 = vmatprep.subr.mxu0 0.0
        %256 = vmatpush1.msra.mxu0 0.0
        %257 = vmatprep.subr.mxu0 0.0
        %258 = vmatpush1.msra.mxu0 0.0
        %259 = vmatprep.subr.mxu0 0.0
        %260 = vmatpush1.msra.mxu0 0.0
        %261 = vmatprep.subr.mxu0 0.0
        %262 = vmatpush1.msra.mxu0 0.0
        %263 = vmatprep.subr.mxu0 0.0
        %264 = vmatpush1.msra.mxu0 0.0
        %265 = vmatprep.subr.mxu0 0.0
        %266 = vmatpush1.msra.mxu0 0.0
        %267 = vmatprep.subr.mxu0 0.0
        %268 = vmatpush1.msra.mxu0 0.0
        %269 = vmatprep.subr.mxu0 0.0
        %270 = vmatpush1.msra.mxu0 0.0
        %271 = vmatprep.subr.mxu0 0.0
        %272 = vmatpush1.msra.mxu0 0.0
        %273 = vmatprep.subr.mxu0 0.0
        %274 = vmatpush1.msra.mxu0 0.0
        %275 = vmatprep.subr.mxu0 0.0
        %276 = vmatpush1.msra.mxu0 0.0
        %277 = vmatprep.subr.mxu0 0.0
        %278 = vmatpush1.msra.mxu0 0.0
        %279 = vmatprep.subr.mxu0 0.0
        %280 = vmatpush1.msra.mxu0 0.0
        %281 = vmatprep.subr.mxu0 0.0
        %282 = vmatpush1.msra.mxu0 0.0
        %283 = vmatprep.subr.mxu0 0.0
        %284 = vmatpush1.msra.mxu0 0.0
        %285 = vmatprep.subr.mxu0 0.0
        %286 = vmatpush1.msra.mxu0 0.0
        %287 = vmatprep.subr.mxu0 0.0
        %288 = vmatpush1.msra.mxu0 0.0
        %289 = vmatprep.subr.mxu0 0.0
        %290 = vmatpush1.msra.mxu0 0.0
        %291 = vmatprep.subr.mxu0 0.0
        %292 = vmatpush1.msra.mxu0 0.0
        %293 = vmatprep.subr.mxu0 0.0
        %294 = vmatpush1.msra.mxu0 0.0
        %295 = vmatprep.subr.mxu0 0.0
        %296 = vmatpush1.msra.mxu0 0.0
        %297 = vmatprep.subr.mxu0 0.0
        %298 = vmatpush1.msra.mxu0 0.0
        %299 = vmatprep.mubr.f32.mxu0 0.0
        %v300 = vand.u32 %v231, 4294901760
        %v301 = vsub.f32 %v231, %v300
        %v302 = vand.u32 %v301, 4294901760
        %v303 = vsub.f32 %v301, %v302
        %v304 = vand.u32 %v303, 4294901760
        %305 = vmatmul.mubr.f32.gmra.mrb[0].mxu0 %v304
        %v306 = vpop.f32.mrb[0].mxu0
        %v307 = vadd.f32 0.0, %v306
        %v308 = vpop.f32.mrb[0].mxu0
        %309 = vdwg.mxu0
        %310 = vmatprep.subr.mxu0 0.0
        %v311 = vand.u32 %v227, 4294901760
        %v312 = vsub.f32 %v227, %v311
        %v313 = vand.u32 %v312, 4294901760
        %v314 = vsub.f32 %v312, %v313
        %v315 = vand.u32 %v314, 4294901760
        %316 = vmatpush1.msra.mxu0 %v315
        %317 = vmatprep.subr.mxu0 0.0
        %v318 = vand.u32 %v228, 4294901760
        %v319 = vsub.f32 %v228, %v318
        %v320 = vand.u32 %v319, 4294901760
        %v321 = vsub.f32 %v319, %v320
        %v322 = vand.u32 %v321, 4294901760
        %323 = vmatpush1.msra.mxu0 %v322
        %324 = vmatprep.subr.mxu0 0.0
        %325 = vmatpush1.msra.mxu0 0.0
        %326 = vmatprep.subr.mxu0 0.0
        %327 = vmatpush1.msra.mxu0 0.0
        %328 = vmatprep.subr.mxu0 0.0
        %329 = vmatpush1.msra.mxu0 0.0
        %330 = vmatprep.subr.mxu0 0.0
        %331 = vmatpush1.msra.mxu0 0.0
        %332 = vmatprep.subr.mxu0 0.0
        %333 = vmatpush1.msra.mxu0 0.0
        %334 = vmatprep.subr.mxu0 0.0
        %335 = vmatpush1.msra.mxu0 0.0
        %336 = vmatprep.subr.mxu0 0.0
        %337 = vmatpush1.msra.mxu0 0.0
        %338 = vmatprep.subr.mxu0 0.0
        %339 = vmatpush1.msra.mxu0 0.0
        %340 = vmatprep.subr.mxu0 0.0
        %341 = vmatpush1.msra.mxu0 0.0
        %342 = vmatprep.subr.mxu0 0.0
        %343 = vmatpush1.msra.mxu0 0.0
        %344 = vmatprep.subr.mxu0 0.0
        %345 = vmatpush1.msra.mxu0 0.0
        %346 = vmatprep.subr.mxu0 0.0
        %347 = vmatpush1.msra.mxu0 0.0
        %348 = vmatprep.subr.mxu0 0.0
        %349 = vmatpush1.msra.mxu0 0.0
        %350 = vmatprep.subr.mxu0 0.0
        %351 = vmatpush1.msra.mxu0 0.0
        %352 = vmatprep.subr.mxu0 0.0
        %353 = vmatpush1.msra.mxu0 0.0
        %354 = vmatprep.subr.mxu0 0.0
        %355 = vmatpush1.msra.mxu0 0.0
        %356 = vmatprep.subr.mxu0 0.0
        %357 = vmatpush1.msra.mxu0 0.0
        %358 = vmatprep.subr.mxu0 0.0
        %359 = vmatpush1.msra.mxu0 0.0
        %360 = vmatprep.subr.mxu0 0.0
        %361 = vmatpush1.msra.mxu0 0.0
        %362 = vmatprep.subr.mxu0 0.0
        %363 = vmatpush1.msra.mxu0 0.0
        %364 = vmatprep.subr.mxu0 0.0
        %365 = vmatpush1.msra.mxu0 0.0
        %366 = vmatprep.subr.mxu0 0.0
        %367 = vmatpush1.msra.mxu0 0.0
        %368 = vmatprep.subr.mxu0 0.0
        %369 = vmatpush1.msra.mxu0 0.0
        %370 = vmatprep.subr.mxu0 0.0
        %371 = vmatpush1.msra.mxu0 0.0
        %372 = vmatprep.subr.mxu0 0.0
        %373 = vmatpush1.msra.mxu0 0.0
        %374 = vmatprep.subr.mxu0 0.0
        %375 = vmatpush1.msra.mxu0 0.0
        %376 = vmatprep.subr.mxu0 0.0
        %377 = vmatpush1.msra.mxu0 0.0
        %378 = vmatprep.subr.mxu0 0.0
        %379 = vmatpush1.msra.mxu0 0.0
        %380 = vmatprep.subr.mxu0 0.0
        %381 = vmatpush1.msra.mxu0 0.0
        %382 = vmatprep.subr.mxu0 0.0
        %383 = vmatpush1.msra.mxu0 0.0
        %384 = vmatprep.mubr.f32.mxu0 0.0
        %v385 = vand.u32 %v231, 4294901760
        %386 = vmatmul.mubr.f32.gmra.mrb[0].mxu0 %v385
        %v387 = vpop.f32.mrb[0].mxu0
        %v388 = vadd.f32 %v307, %v387
        %v389 = vpop.f32.mrb[0].mxu0
        %390 = vdwg.mxu0
        %391 = vmatprep.subr.mxu0 0.0
        %v392 = vand.u32 %v227, 4294901760
        %v393 = vsub.f32 %v227, %v392
        %394 = vmatpush1.msra.mxu0 %v393
        %395 = vmatprep.subr.mxu0 0.0
        %v396 = vand.u32 %v228, 4294901760
        %v397 = vsub.f32 %v228, %v396
        %398 = vmatpush1.msra.mxu0 %v397
        %399 = vmatprep.subr.mxu0 0.0
        %400 = vmatpush1.msra.mxu0 0.0
        %401 = vmatprep.subr.mxu0 0.0
        %402 = vmatpush1.msra.mxu0 0.0
        %403 = vmatprep.subr.mxu0 0.0
        %404 = vmatpush1.msra.mxu0 0.0
        %405 = vmatprep.subr.mxu0 0.0
        %406 = vmatpush1.msra.mxu0 0.0
        %407 = vmatprep.subr.mxu0 0.0
        %408 = vmatpush1.msra.mxu0 0.0
        %409 = vmatprep.subr.mxu0 0.0
        %410 = vmatpush1.msra.mxu0 0.0
        %411 = vmatprep.subr.mxu0 0.0
        %412 = vmatpush1.msra.mxu0 0.0
        %413 = vmatprep.subr.mxu0 0.0
        %414 = vmatpush1.msra.mxu0 0.0
        %415 = vmatprep.subr.mxu0 0.0
        %416 = vmatpush1.msra.mxu0 0.0
        %417 = vmatprep.subr.mxu0 0.0
        %418 = vmatpush1.msra.mxu0 0.0
        %419 = vmatprep.subr.mxu0 0.0
        %420 = vmatpush1.msra.mxu0 0.0
        %421 = vmatprep.subr.mxu0 0.0
        %422 = vmatpush1.msra.mxu0 0.0
        %423 = vmatprep.subr.mxu0 0.0
        %424 = vmatpush1.msra.mxu0 0.0
        %425 = vmatprep.subr.mxu0 0.0
        %426 = vmatpush1.msra.mxu0 0.0
        %427 = vmatprep.subr.mxu0 0.0
        %428 = vmatpush1.msra.mxu0 0.0
        %429 = vmatprep.subr.mxu0 0.0
        %430 = vmatpush1.msra.mxu0 0.0
        %431 = vmatprep.subr.mxu0 0.0
        %432 = vmatpush1.msra.mxu0 0.0
        %433 = vmatprep.subr.mxu0 0.0
        %434 = vmatpush1.msra.mxu0 0.0
        %435 = vmatprep.subr.mxu0 0.0
        %436 = vmatpush1.msra.mxu0 0.0
        %437 = vmatprep.subr.mxu0 0.0
        %438 = vmatpush1.msra.mxu0 0.0
        %439 = vmatprep.subr.mxu0 0.0
        %440 = vmatpush1.msra.mxu0 0.0
        %441 = vmatprep.subr.mxu0 0.0
        %442 = vmatpush1.msra.mxu0 0.0
        %443 = vmatprep.subr.mxu0 0.0
        %444 = vmatpush1.msra.mxu0 0.0
        %445 = vmatprep.subr.mxu0 0.0
        %446 = vmatpush1.msra.mxu0 0.0
        %447 = vmatprep.subr.mxu0 0.0
        %448 = vmatpush1.msra.mxu0 0.0
        %449 = vmatprep.subr.mxu0 0.0
        %450 = vmatpush1.msra.mxu0 0.0
        %451 = vmatprep.subr.mxu0 0.0
        %452 = vmatpush1.msra.mxu0 0.0
        %453 = vmatprep.subr.mxu0 0.0
        %454 = vmatpush1.msra.mxu0 0.0
        %455 = vmatprep.subr.mxu0 0.0
        %456 = vmatpush1.msra.mxu0 0.0
        %457 = vmatprep.subr.mxu0 0.0
        %458 = vmatpush1.msra.mxu0 0.0
        %459 = vmatprep.mubr.f32.mxu0 0.0
        %v460 = vand.u32 %v231, 4294901760
        %v461 = vsub.f32 %v231, %v460
        %462 = vmatmul.mubr.f32.gmra.mrb[0].mxu0 %v461
        %v463 = vpop.f32.mrb[0].mxu0
        %v464 = vadd.f32 %v388, %v463
        %v465 = vpop.f32.mrb[0].mxu0
        %466 = vdwg.mxu0
        %467 = vmatprep.subr.mxu0 0.0
        %v468 = vand.u32 %v227, 4294901760
        %469 = vmatpush1.msra.mxu0 %v468
        %470 = vmatprep.subr.mxu0 0.0
        %v471 = vand.u32 %v228, 4294901760
        %472 = vmatpush1.msra.mxu0 %v471
        %473 = vmatprep.subr.mxu0 0.0
        %474 = vmatpush1.msra.mxu0 0.0
        %475 = vmatprep.subr.mxu0 0.0
        %476 = vmatpush1.msra.mxu0 0.0
        %477 = vmatprep.subr.mxu0 0.0
        %478 = vmatpush1.msra.mxu0 0.0
        %479 = vmatprep.subr.mxu0 0.0
        %480 = vmatpush1.msra.mxu0 0.0
        %481 = vmatprep.subr.mxu0 0.0
        %482 = vmatpush1.msra.mxu0 0.0
        %483 = vmatprep.subr.mxu0 0.0
        %484 = vmatpush1.msra.mxu0 0.0
        %485 = vmatprep.subr.mxu0 0.0
        %486 = vmatpush1.msra.mxu0 0.0
        %487 = vmatprep.subr.mxu0 0.0
        %488 = vmatpush1.msra.mxu0 0.0
        %489 = vmatprep.subr.mxu0 0.0
        %490 = vmatpush1.msra.mxu0 0.0
        %491 = vmatprep.subr.mxu0 0.0
        %492 = vmatpush1.msra.mxu0 0.0
        %493 = vmatprep.subr.mxu0 0.0
        %494 = vmatpush1.msra.mxu0 0.0
        %495 = vmatprep.subr.mxu0 0.0
        %496 = vmatpush1.msra.mxu0 0.0
        %497 = vmatprep.subr.mxu0 0.0
        %498 = vmatpush1.msra.mxu0 0.0
        %499 = vmatprep.subr.mxu0 0.0
        %500 = vmatpush1.msra.mxu0 0.0
        %501 = vmatprep.subr.mxu0 0.0
        %502 = vmatpush1.msra.mxu0 0.0
        %503 = vmatprep.subr.mxu0 0.0
        %504 = vmatpush1.msra.mxu0 0.0
        %505 = vmatprep.subr.mxu0 0.0
        %506 = vmatpush1.msra.mxu0 0.0
        %507 = vmatprep.subr.mxu0 0.0
        %508 = vmatpush1.msra.mxu0 0.0
        %509 = vmatprep.subr.mxu0 0.0
        %510 = vmatpush1.msra.mxu0 0.0
        %511 = vmatprep.subr.mxu0 0.0
        %512 = vmatpush1.msra.mxu0 0.0
        %513 = vmatprep.subr.mxu0 0.0
        %514 = vmatpush1.msra.mxu0 0.0
        %515 = vmatprep.subr.mxu0 0.0
        %516 = vmatpush1.msra.mxu0 0.0
        %517 = vmatprep.subr.mxu0 0.0
        %518 = vmatpush1.msra.mxu0 0.0
        %519 = vmatprep.subr.mxu0 0.0
        %520 = vmatpush1.msra.mxu0 0.0
        %521 = vmatprep.subr.mxu0 0.0
        %522 = vmatpush1.msra.mxu0 0.0
        %523 = vmatprep.subr.mxu0 0.0
        %524 = vmatpush1.msra.mxu0 0.0
        %525 = vmatprep.subr.mxu0 0.0
        %526 = vmatpush1.msra.mxu0 0.0
        %527 = vmatprep.subr.mxu0 0.0
        %528 = vmatpush1.msra.mxu0 0.0
        %529 = vmatprep.subr.mxu0 0.0
        %530 = vmatpush1.msra.mxu0 0.0
        %531 = vmatprep.subr.mxu0 0.0
        %532 = vmatpush1.msra.mxu0 0.0
        %533 = vmatprep.mubr.f32.mxu0 0.0
        %v534 = vand.u32 %v231, 4294901760
        %v535 = vsub.f32 %v231, %v534
        %v536 = vand.u32 %v535, 4294901760
        %537 = vmatmul.mubr.f32.gmra.mrb[0].mxu0 %v536
        %v538 = vpop.f32.mrb[0].mxu0
        %v539 = vadd.f32 %v464, %v538
        %v540 = vpop.f32.mrb[0].mxu0
        %541 = vdwg.mxu0
        %542 = vmatprep.subr.mxu0 0.0
        %v543 = vand.u32 %v227, 4294901760
        %v544 = vsub.f32 %v227, %v543
        %v545 = vand.u32 %v544, 4294901760
        %546 = vmatpush1.msra.mxu0 %v545
        %547 = vmatprep.subr.mxu0 0.0
        %v548 = vand.u32 %v228, 4294901760
        %v549 = vsub.f32 %v228, %v548
        %v550 = vand.u32 %v549, 4294901760
        %551 = vmatpush1.msra.mxu0 %v550
        %552 = vmatprep.subr.mxu0 0.0
        %553 = vmatpush1.msra.mxu0 0.0
        %554 = vmatprep.subr.mxu0 0.0
        %555 = vmatpush1.msra.mxu0 0.0
        %556 = vmatprep.subr.mxu0 0.0
        %557 = vmatpush1.msra.mxu0 0.0
        %558 = vmatprep.subr.mxu0 0.0
        %559 = vmatpush1.msra.mxu0 0.0
        %560 = vmatprep.subr.mxu0 0.0
        %561 = vmatpush1.msra.mxu0 0.0
        %562 = vmatprep.subr.mxu0 0.0
        %563 = vmatpush1.msra.mxu0 0.0
        %564 = vmatprep.subr.mxu0 0.0
        %565 = vmatpush1.msra.mxu0 0.0
        %566 = vmatprep.subr.mxu0 0.0
        %567 = vmatpush1.msra.mxu0 0.0
        %568 = vmatprep.subr.mxu0 0.0
        %569 = vmatpush1.msra.mxu0 0.0
        %570 = vmatprep.subr.mxu0 0.0
        %571 = vmatpush1.msra.mxu0 0.0
        %572 = vmatprep.subr.mxu0 0.0
        %573 = vmatpush1.msra.mxu0 0.0
        %574 = vmatprep.subr.mxu0 0.0
        %575 = vmatpush1.msra.mxu0 0.0
        %576 = vmatprep.subr.mxu0 0.0
        %577 = vmatpush1.msra.mxu0 0.0
        %578 = vmatprep.subr.mxu0 0.0
        %579 = vmatpush1.msra.mxu0 0.0
        %580 = vmatprep.subr.mxu0 0.0
        %581 = vmatpush1.msra.mxu0 0.0
        %582 = vmatprep.subr.mxu0 0.0
        %583 = vmatpush1.msra.mxu0 0.0
        %584 = vmatprep.subr.mxu0 0.0
        %585 = vmatpush1.msra.mxu0 0.0
        %586 = vmatprep.subr.mxu0 0.0
        %587 = vmatpush1.msra.mxu0 0.0
        %588 = vmatprep.subr.mxu0 0.0
        %589 = vmatpush1.msra.mxu0 0.0
        %590 = vmatprep.subr.mxu0 0.0
        %591 = vmatpush1.msra.mxu0 0.0
        %592 = vmatprep.subr.mxu0 0.0
        %593 = vmatpush1.msra.mxu0 0.0
        %594 = vmatprep.subr.mxu0 0.0
        %595 = vmatpush1.msra.mxu0 0.0
        %596 = vmatprep.subr.mxu0 0.0
        %597 = vmatpush1.msra.mxu0 0.0
        %598 = vmatprep.subr.mxu0 0.0
        %599 = vmatpush1.msra.mxu0 0.0
        %600 = vmatprep.subr.mxu0 0.0
        %601 = vmatpush1.msra.mxu0 0.0
        %602 = vmatprep.subr.mxu0 0.0
        %603 = vmatpush1.msra.mxu0 0.0
        %604 = vmatprep.subr.mxu0 0.0
        %605 = vmatpush1.msra.mxu0 0.0
        %606 = vmatprep.subr.mxu0 0.0
        %607 = vmatpush1.msra.mxu0 0.0
        %608 = vmatprep.subr.mxu0 0.0
        %609 = vmatpush1.msra.mxu0 0.0
        %610 = vmatprep.subr.mxu0 0.0
        %611 = vmatpush1.msra.mxu0 0.0
        %612 = vmatprep.mubr.f32.mxu0 0.0
        %v613 = vand.u32 %v231, 4294901760
        %614 = vmatmul.mubr.f32.gmra.mrb[0].mxu0 %v613
        %v615 = vpop.f32.mrb[0].mxu0
        %v616 = vadd.f32 %v539, %v615
        %v617 = vpop.f32.mrb[0].mxu0
        %618 = vdwg.mxu0
        %619 = vmatprep.subr.mxu0 0.0
        %v620 = vand.u32 %v227, 4294901760
        %621 = vmatpush1.msra.mxu0 %v620
        %622 = vmatprep.subr.mxu0 0.0
        %v623 = vand.u32 %v228, 4294901760
        %624 = vmatpush1.msra.mxu0 %v623
        %625 = vmatprep.subr.mxu0 0.0
        %626 = vmatpush1.msra.mxu0 0.0
        %627 = vmatprep.subr.mxu0 0.0
        %628 = vmatpush1.msra.mxu0 0.0
        %629 = vmatprep.subr.mxu0 0.0
        %630 = vmatpush1.msra.mxu0 0.0
        %631 = vmatprep.subr.mxu0 0.0
        %632 = vmatpush1.msra.mxu0 0.0
        %633 = vmatprep.subr.mxu0 0.0
        %634 = vmatpush1.msra.mxu0 0.0
        %635 = vmatprep.subr.mxu0 0.0
        %636 = vmatpush1.msra.mxu0 0.0
        %637 = vmatprep.subr.mxu0 0.0
        %638 = vmatpush1.msra.mxu0 0.0
        %639 = vmatprep.subr.mxu0 0.0
        %640 = vmatpush1.msra.mxu0 0.0
        %641 = vmatprep.subr.mxu0 0.0
        %642 = vmatpush1.msra.mxu0 0.0
        %643 = vmatprep.subr.mxu0 0.0
        %644 = vmatpush1.msra.mxu0 0.0
        %645 = vmatprep.subr.mxu0 0.0
        %646 = vmatpush1.msra.mxu0 0.0
        %647 = vmatprep.subr.mxu0 0.0
        %648 = vmatpush1.msra.mxu0 0.0
        %649 = vmatprep.subr.mxu0 0.0
        %650 = vmatpush1.msra.mxu0 0.0
        %651 = vmatprep.subr.mxu0 0.0
        %652 = vmatpush1.msra.mxu0 0.0
        %653 = vmatprep.subr.mxu0 0.0
        %654 = vmatpush1.msra.mxu0 0.0
        %655 = vmatprep.subr.mxu0 0.0
        %656 = vmatpush1.msra.mxu0 0.0
        %657 = vmatprep.subr.mxu0 0.0
        %658 = vmatpush1.msra.mxu0 0.0
        %659 = vmatprep.subr.mxu0 0.0
        %660 = vmatpush1.msra.mxu0 0.0
        %661 = vmatprep.subr.mxu0 0.0
        %662 = vmatpush1.msra.mxu0 0.0
        %663 = vmatprep.subr.mxu0 0.0
        %664 = vmatpush1.msra.mxu0 0.0
        %665 = vmatprep.subr.mxu0 0.0
        %666 = vmatpush1.msra.mxu0 0.0
        %667 = vmatprep.subr.mxu0 0.0
        %668 = vmatpush1.msra.mxu0 0.0
        %669 = vmatprep.subr.mxu0 0.0
        %670 = vmatpush1.msra.mxu0 0.0
        %671 = vmatprep.subr.mxu0 0.0
        %672 = vmatpush1.msra.mxu0 0.0
        %673 = vmatprep.subr.mxu0 0.0
        %674 = vmatpush1.msra.mxu0 0.0
        %675 = vmatprep.subr.mxu0 0.0
        %676 = vmatpush1.msra.mxu0 0.0
        %677 = vmatprep.subr.mxu0 0.0
        %678 = vmatpush1.msra.mxu0 0.0
        %679 = vmatprep.subr.mxu0 0.0
        %680 = vmatpush1.msra.mxu0 0.0
        %681 = vmatprep.subr.mxu0 0.0
        %682 = vmatpush1.msra.mxu0 0.0
        %683 = vmatprep.subr.mxu0 0.0
        %684 = vmatpush1.msra.mxu0 0.0
        %685 = vmatprep.mubr.f32.mxu0 0.0
        %v686 = vand.u32 %v231, 4294901760
        %687 = vmatmul.mubr.f32.gmra.mrb[0].mxu0 %v686
        %v688 = vpop.f32.mrb[0].mxu0
        %v689 = vadd.f32 %v616, %v688
        %v690 = vpop.f32.mrb[0].mxu0
        %691 = vdwg.mxu0
        %v692 = vadd.f32 %v198, %v689
        %s693 = sadd.s32 %s199, 3
        %s694 = sld [smem:[#allocation4 + %s693]]
        %v695 = vstv %s694
        %v696 = vsel %vm203, %v695, 0.0
        %v697 = vsel %vm204, %v695, 0.0
        %v698 = vadd.f32 %v696, 0.0
        %v699 = vadd.f32 %v697, 0.0
        %s700 = sadd.s32 %s199, 4
        %s701 = sld [smem:[#allocation4 + %s700]]
        %v702 = vstv %s701
        %v703 = vsel %vm212, %v702, 0.0
        %v704 = vsel %vm213, %v702, 0.0
        %v705 = vadd.f32 %v698, %v703
        %v706 = vadd.f32 %v699, %v704
        %s707 = sadd.s32 %s199, 5
        %s708 = sld [smem:[#allocation4 + %s707]]
        %v709 = vstv %s708
        %v710 = vsel %vm222, %v709, 0.0
        %v711 = vsel %vm223, %v709, 0.0
        %v712 = vadd.f32 %v705, %v710
        %v713 = vadd.f32 %v706, %v711
        %v714 = vsel %vm229, %v172, 0
        %716 = vmatprep.subr.mxu0 0.0
        %v717 = vand.u32 %v712, 4294901760
        %718 = vmatpush1.msra.mxu0 %v717
        %719 = vmatprep.subr.mxu0 0.0
        %v720 = vand.u32 %v713, 4294901760
        %721 = vmatpush1.msra.mxu0 %v720
        %722 = vmatprep.subr.mxu0 0.0
        %723 = vmatpush1.msra.mxu0 0.0
        %724 = vmatprep.subr.mxu0 0.0
        %725 = vmatpush1.msra.mxu0 0.0
        %726 = vmatprep.subr.mxu0 0.0
        %727 = vmatpush1.msra.mxu0 0.0
        %728 = vmatprep.subr.mxu0 0.0
        %729 = vmatpush1.msra.mxu0 0.0
        %730 = vmatprep.subr.mxu0 0.0
        %731 = vmatpush1.msra.mxu0 0.0
        %732 = vmatprep.subr.mxu0 0.0
        %733 = vmatpush1.msra.mxu0 0.0
        %734 = vmatprep.subr.mxu0 0.0
        %735 = vmatpush1.msra.mxu0 0.0
        %736 = vmatprep.subr.mxu0 0.0
        %737 = vmatpush1.msra.mxu0 0.0
        %738 = vmatprep.subr.mxu0 0.0
        %739 = vmatpush1.msra.mxu0 0.0
        %740 = vmatprep.subr.mxu0 0.0
        %741 = vmatpush1.msra.mxu0 0.0
        %742 = vmatprep.subr.mxu0 0.0
        %743 = vmatpush1.msra.mxu0 0.0
        %744 = vmatprep.subr.mxu0 0.0
        %745 = vmatpush1.msra.mxu0 0.0
        %746 = vmatprep.subr.mxu0 0.0
        %747 = vmatpush1.msra.mxu0 0.0
        %748 = vmatprep.subr.mxu0 0.0
        %749 = vmatpush1.msra.mxu0 0.0
        %750 = vmatprep.subr.mxu0 0.0
        %751 = vmatpush1.msra.mxu0 0.0
        %752 = vmatprep.subr.mxu0 0.0
        %753 = vmatpush1.msra.mxu0 0.0
        %754 = vmatprep.subr.mxu0 0.0
        %755 = vmatpush1.msra.mxu0 0.0
        %756 = vmatprep.subr.mxu0 0.0
        %757 = vmatpush1.msra.mxu0 0.0
        %758 = vmatprep.subr.mxu0 0.0
        %759 = vmatpush1.msra.mxu0 0.0
        %760 = vmatprep.subr.mxu0 0.0
        %761 = vmatpush1.msra.mxu0 0.0
        %762 = vmatprep.subr.mxu0 0.0
        %763 = vmatpush1.msra.mxu0 0.0
        %764 = vmatprep.subr.mxu0 0.0
        %765 = vmatpush1.msra.mxu0 0.0
        %766 = vmatprep.subr.mxu0 0.0
        %767 = vmatpush1.msra.mxu0 0.0
        %768 = vmatprep.subr.mxu0 0.0
        %769 = vmatpush1.msra.mxu0 0.0
        %770 = vmatprep.subr.mxu0 0.0
        %771 = vmatpush1.msra.mxu0 0.0
        %772 = vmatprep.subr.mxu0 0.0
        %773 = vmatpush1.msra.mxu0 0.0
        %774 = vmatprep.subr.mxu0 0.0
        %775 = vmatpush1.msra.mxu0 0.0
        %776 = vmatprep.subr.mxu0 0.0
        %777 = vmatpush1.msra.mxu0 0.0
        %778 = vmatprep.subr.mxu0 0.0
        %779 = vmatpush1.msra.mxu0 0.0
        %780 = vmatprep.subr.mxu0 0.0
        %781 = vmatpush1.msra.mxu0 0.0
        %782 = vmatprep.mubr.f32.mxu0 0.0
        %v783 = vand.u32 %v714, 4294901760
        %v784 = vsub.f32 %v714, %v783
        %v785 = vand.u32 %v784, 4294901760
        %v786 = vsub.f32 %v784, %v785
        %v787 = vand.u32 %v786, 4294901760
        %788 = vmatmul.mubr.f32.gmra.mrb[0].mxu0 %v787
        %v789 = vpop.f32.mrb[0].mxu0
        %v790 = vadd.f32 0.0, %v789
        %v791 = vpop.f32.mrb[0].mxu0
        %792 = vdwg.mxu0
        %793 = vmatprep.subr.mxu0 0.0
        %v794 = vand.u32 %v712, 4294901760
        %v795 = vsub.f32 %v712, %v794
        %v796 = vand.u32 %v795, 4294901760
        %v797 = vsub.f32 %v795, %v796
        %v798 = vand.u32 %v797, 4294901760
        %799 = vmatpush1.msra.mxu0 %v798
        %800 = vmatprep.subr.mxu0 0.0
        %v801 = vand.u32 %v713, 4294901760
        %v802 = vsub.f32 %v713, %v801
        %v803 = vand.u32 %v802, 4294901760
        %v804 = vsub.f32 %v802, %v803
        %v805 = vand.u32 %v804, 4294901760
        %806 = vmatpush1.msra.mxu0 %v805
        %807 = vmatprep.subr.mxu0 0.0
        %808 = vmatpush1.msra.mxu0 0.0
        %809 = vmatprep.subr.mxu0 0.0
        %810 = vmatpush1.msra.mxu0 0.0
        %811 = vmatprep.subr.mxu0 0.0
        %812 = vmatpush1.msra.mxu0 0.0
        %813 = vmatprep.subr.mxu0 0.0
        %814 = vmatpush1.msra.mxu0 0.0
        %815 = vmatprep.subr.mxu0 0.0
        %816 = vmatpush1.msra.mxu0 0.0
        %817 = vmatprep.subr.mxu0 0.0
        %818 = vmatpush1.msra.mxu0 0.0
        %819 = vmatprep.subr.mxu0 0.0
        %820 = vmatpush1.msra.mxu0 0.0
        %821 = vmatprep.subr.mxu0 0.0
        %822 = vmatpush1.msra.mxu0 0.0
        %823 = vmatprep.subr.mxu0 0.0
        %824 = vmatpush1.msra.mxu0 0.0
        %825 = vmatprep.subr.mxu0 0.0
        %826 = vmatpush1.msra.mxu0 0.0
        %827 = vmatprep.subr.mxu0 0.0
        %828 = vmatpush1.msra.mxu0 0.0
        %829 = vmatprep.subr.mxu0 0.0
        %830 = vmatpush1.msra.mxu0 0.0
        %831 = vmatprep.subr.mxu0 0.0
        %832 = vmatpush1.msra.mxu0 0.0
        %833 = vmatprep.subr.mxu0 0.0
        %834 = vmatpush1.msra.mxu0 0.0
        %835 = vmatprep.subr.mxu0 0.0
        %836 = vmatpush1.msra.mxu0 0.0
        %837 = vmatprep.subr.mxu0 0.0
        %838 = vmatpush1.msra.mxu0 0.0
        %839 = vmatprep.subr.mxu0 0.0
        %840 = vmatpush1.msra.mxu0 0.0
        %841 = vmatprep.subr.mxu0 0.0
        %842 = vmatpush1.msra.mxu0 0.0
        %843 = vmatprep.subr.mxu0 0.0
        %844 = vmatpush1.msra.mxu0 0.0
        %845 = vmatprep.subr.mxu0 0.0
        %846 = vmatpush1.msra.mxu0 0.0
        %847 = vmatprep.subr.mxu0 0.0
        %848 = vmatpush1.msra.mxu0 0.0
        %849 = vmatprep.subr.mxu0 0.0
        %850 = vmatpush1.msra.mxu0 0.0
        %851 = vmatprep.subr.mxu0 0.0
        %852 = vmatpush1.msra.mxu0 0.0
        %853 = vmatprep.subr.mxu0 0.0
        %854 = vmatpush1.msra.mxu0 0.0
        %855 = vmatprep.subr.mxu0 0.0
        %856 = vmatpush1.msra.mxu0 0.0
        %857 = vmatprep.subr.mxu0 0.0
        %858 = vmatpush1.msra.mxu0 0.0
        %859 = vmatprep.subr.mxu0 0.0
        %860 = vmatpush1.msra.mxu0 0.0
        %861 = vmatprep.subr.mxu0 0.0
        %862 = vmatpush1.msra.mxu0 0.0
        %863 = vmatprep.subr.mxu0 0.0
        %864 = vmatpush1.msra.mxu0 0.0
        %865 = vmatprep.subr.mxu0 0.0
        %866 = vmatpush1.msra.mxu0 0.0
        %867 = vmatprep.mubr.f32.mxu0 0.0
        %v868 = vand.u32 %v714, 4294901760
        %869 = vmatmul.mubr.f32.gmra.mrb[0].mxu0 %v868
        %v870 = vpop.f32.mrb[0].mxu0
        %v871 = vadd.f32 %v790, %v870
        %v872 = vpop.f32.mrb[0].mxu0
        %873 = vdwg.mxu0
        %874 = vmatprep.subr.mxu0 0.0
        %v875 = vand.u32 %v712, 4294901760
        %v876 = vsub.f32 %v712, %v875
        %877 = vmatpush1.msra.mxu0 %v876
        %878 = vmatprep.subr.mxu0 0.0
        %v879 = vand.u32 %v713, 4294901760
        %v880 = vsub.f32 %v713, %v879
        %881 = vmatpush1.msra.mxu0 %v880
        %882 = vmatprep.subr.mxu0 0.0
        %883 = vmatpush1.msra.mxu0 0.0
        %884 = vmatprep.subr.mxu0 0.0
        %885 = vmatpush1.msra.mxu0 0.0
        %886 = vmatprep.subr.mxu0 0.0
        %887 = vmatpush1.msra.mxu0 0.0
        %888 = vmatprep.subr.mxu0 0.0
        %889 = vmatpush1.msra.mxu0 0.0
        %890 = vmatprep.subr.mxu0 0.0
        %891 = vmatpush1.msra.mxu0 0.0
        %892 = vmatprep.subr.mxu0 0.0
        %893 = vmatpush1.msra.mxu0 0.0
        %894 = vmatprep.subr.mxu0 0.0
        %895 = vmatpush1.msra.mxu0 0.0
        %896 = vmatprep.subr.mxu0 0.0
        %897 = vmatpush1.msra.mxu0 0.0
        %898 = vmatprep.subr.mxu0 0.0
        %899 = vmatpush1.msra.mxu0 0.0
        %900 = vmatprep.subr.mxu0 0.0
        %901 = vmatpush1.msra.mxu0 0.0
        %902 = vmatprep.subr.mxu0 0.0
        %903 = vmatpush1.msra.mxu0 0.0
        %904 = vmatprep.subr.mxu0 0.0
        %905 = vmatpush1.msra.mxu0 0.0
        %906 = vmatprep.subr.mxu0 0.0
        %907 = vmatpush1.msra.mxu0 0.0
        %908 = vmatprep.subr.mxu0 0.0
        %909 = vmatpush1.msra.mxu0 0.0
        %910 = vmatprep.subr.mxu0 0.0
        %911 = vmatpush1.msra.mxu0 0.0
        %912 = vmatprep.subr.mxu0 0.0
        %913 = vmatpush1.msra.mxu0 0.0
        %914 = vmatprep.subr.mxu0 0.0
        %915 = vmatpush1.msra.mxu0 0.0
        %916 = vmatprep.subr.mxu0 0.0
        %917 = vmatpush1.msra.mxu0 0.0
        %918 = vmatprep.subr.mxu0 0.0
        %919 = vmatpush1.msra.mxu0 0.0
        %920 = vmatprep.subr.mxu0 0.0
        %921 = vmatpush1.msra.mxu0 0.0
        %922 = vmatprep.subr.mxu0 0.0
        %923 = vmatpush1.msra.mxu0 0.0
        %924 = vmatprep.subr.mxu0 0.0
        %925 = vmatpush1.msra.mxu0 0.0
        %926 = vmatprep.subr.mxu0 0.0
        %927 = vmatpush1.msra.mxu0 0.0
        %928 = vmatprep.subr.mxu0 0.0
        %929 = vmatpush1.msra.mxu0 0.0
        %930 = vmatprep.subr.mxu0 0.0
        %931 = vmatpush1.msra.mxu0 0.0
        %932 = vmatprep.subr.mxu0 0.0
        %933 = vmatpush1.msra.mxu0 0.0
        %934 = vmatprep.subr.mxu0 0.0
        %935 = vmatpush1.msra.mxu0 0.0
        %936 = vmatprep.subr.mxu0 0.0
        %937 = vmatpush1.msra.mxu0 0.0
        %938 = vmatprep.subr.mxu0 0.0
        %939 = vmatpush1.msra.mxu0 0.0
        %940 = vmatprep.subr.mxu0 0.0
        %941 = vmatpush1.msra.mxu0 0.0
        %942 = vmatprep.mubr.f32.mxu0 0.0
        %v943 = vand.u32 %v714, 4294901760
        %v944 = vsub.f32 %v714, %v943
        %945 = vmatmul.mubr.f32.gmra.mrb[0].mxu0 %v944
        %v946 = vpop.f32.mrb[0].mxu0
        %v947 = vadd.f32 %v871, %v946
        %v948 = vpop.f32.mrb[0].mxu0
        %949 = vdwg.mxu0
        %950 = vmatprep.subr.mxu0 0.0
        %v951 = vand.u32 %v712, 4294901760
        %952 = vmatpush1.msra.mxu0 %v951
        %953 = vmatprep.subr.mxu0 0.0
        %v954 = vand.u32 %v713, 4294901760
        %955 = vmatpush1.msra.mxu0 %v954
        %956 = vmatprep.subr.mxu0 0.0
        %957 = vmatpush1.msra.mxu0 0.0
        %958 = vmatprep.subr.mxu0 0.0
        %959 = vmatpush1.msra.mxu0 0.0
        %960 = vmatprep.subr.mxu0 0.0
        %961 = vmatpush1.msra.mxu0 0.0
        %962 = vmatprep.subr.mxu0 0.0
        %963 = vmatpush1.msra.mxu0 0.0
        %964 = vmatprep.subr.mxu0 0.0
        %965 = vmatpush1.msra.mxu0 0.0
        %966 = vmatprep.subr.mxu0 0.0
        %967 = vmatpush1.msra.mxu0 0.0
        %968 = vmatprep.subr.mxu0 0.0
        %969 = vmatpush1.msra.mxu0 0.0
        %970 = vmatprep.subr.mxu0 0.0
        %971 = vmatpush1.msra.mxu0 0.0
        %972 = vmatprep.subr.mxu0 0.0
        %973 = vmatpush1.msra.mxu0 0.0
        %974 = vmatprep.subr.mxu0 0.0
        %975 = vmatpush1.msra.mxu0 0.0
        %976 = vmatprep.subr.mxu0 0.0
        %977 = vmatpush1.msra.mxu0 0.0
        %978 = vmatprep.subr.mxu0 0.0
        %979 = vmatpush1.msra.mxu0 0.0
        %980 = vmatprep.subr.mxu0 0.0
        %981 = vmatpush1.msra.mxu0 0.0
        %982 = vmatprep.subr.mxu0 0.0
        %983 = vmatpush1.msra.mxu0 0.0
        %984 = vmatprep.subr.mxu0 0.0
        %985 = vmatpush1.msra.mxu0 0.0
        %986 = vmatprep.subr.mxu0 0.0
        %987 = vmatpush1.msra.mxu0 0.0
        %988 = vmatprep.subr.mxu0 0.0
        %989 = vmatpush1.msra.mxu0 0.0
        %990 = vmatprep.subr.mxu0 0.0
        %991 = vmatpush1.msra.mxu0 0.0
        %992 = vmatprep.subr.mxu0 0.0
        %993 = vmatpush1.msra.mxu0 0.0
        %994 = vmatprep.subr.mxu0 0.0
        %995 = vmatpush1.msra.mxu0 0.0
        %996 = vmatprep.subr.mxu0 0.0
        %997 = vmatpush1.msra.mxu0 0.0
        %998 = vmatprep.subr.mxu0 0.0
        %999 = vmatpush1.msra.mxu0 0.0
        %1000 = vmatprep.subr.mxu0 0.0
        %1001 = vmatpush1.msra.mxu0 0.0
        %1002 = vmatprep.subr.mxu0 0.0
        %1003 = vmatpush1.msra.mxu0 0.0
        %1004 = vmatprep.subr.mxu0 0.0
        %1005 = vmatpush1.msra.mxu0 0.0
        %1006 = vmatprep.subr.mxu0 0.0
        %1007 = vmatpush1.msra.mxu0 0.0
        %1008 = vmatprep.subr.mxu0 0.0
        %1009 = vmatpush1.msra.mxu0 0.0
        %1010 = vmatprep.subr.mxu0 0.0
        %1011 = vmatpush1.msra.mxu0 0.0
        %1012 = vmatprep.subr.mxu0 0.0
        %1013 = vmatpush1.msra.mxu0 0.0
        %1014 = vmatprep.subr.mxu0 0.0
        %1015 = vmatpush1.msra.mxu0 0.0
        %1016 = vmatprep.mubr.f32.mxu0 0.0
        %v1017 = vand.u32 %v714, 4294901760
        %v1018 = vsub.f32 %v714, %v1017
        %v1019 = vand.u32 %v1018, 4294901760
        %1020 = vmatmul.mubr.f32.gmra.mrb[0].mxu0 %v1019
        %v1021 = vpop.f32.mrb[0].mxu0
        %v1022 = vadd.f32 %v947, %v1021
        %v1023 = vpop.f32.mrb[0].mxu0
        %1024 = vdwg.mxu0
        %1025 = vmatprep.subr.mxu0 0.0
        %v1026 = vand.u32 %v712, 4294901760
        %v1027 = vsub.f32 %v712, %v1026
        %v1028 = vand.u32 %v1027, 4294901760
        %1029 = vmatpush1.msra.mxu0 %v1028
        %1030 = vmatprep.subr.mxu0 0.0
        %v1031 = vand.u32 %v713, 4294901760
        %v1032 = vsub.f32 %v713, %v1031
        %v1033 = vand.u32 %v1032, 4294901760
        %1034 = vmatpush1.msra.mxu0 %v1033
        %1035 = vmatprep.subr.mxu0 0.0
        %1036 = vmatpush1.msra.mxu0 0.0
        %1037 = vmatprep.subr.mxu0 0.0
        %1038 = vmatpush1.msra.mxu0 0.0
        %1039 = vmatprep.subr.mxu0 0.0
        %1040 = vmatpush1.msra.mxu0 0.0
        %1041 = vmatprep.subr.mxu0 0.0
        %1042 = vmatpush1.msra.mxu0 0.0
        %1043 = vmatprep.subr.mxu0 0.0
        %1044 = vmatpush1.msra.mxu0 0.0
        %1045 = vmatprep.subr.mxu0 0.0
        %1046 = vmatpush1.msra.mxu0 0.0
        %1047 = vmatprep.subr.mxu0 0.0
        %1048 = vmatpush1.msra.mxu0 0.0
        %1049 = vmatprep.subr.mxu0 0.0
        %1050 = vmatpush1.msra.mxu0 0.0
        %1051 = vmatprep.subr.mxu0 0.0
        %1052 = vmatpush1.msra.mxu0 0.0
        %1053 = vmatprep.subr.mxu0 0.0
        %1054 = vmatpush1.msra.mxu0 0.0
        %1055 = vmatprep.subr.mxu0 0.0
        %1056 = vmatpush1.msra.mxu0 0.0
        %1057 = vmatprep.subr.mxu0 0.0
        %1058 = vmatpush1.msra.mxu0 0.0
        %1059 = vmatprep.subr.mxu0 0.0
        %1060 = vmatpush1.msra.mxu0 0.0
        %1061 = vmatprep.subr.mxu0 0.0
        %1062 = vmatpush1.msra.mxu0 0.0
        %1063 = vmatprep.subr.mxu0 0.0
        %1064 = vmatpush1.msra.mxu0 0.0
        %1065 = vmatprep.subr.mxu0 0.0
        %1066 = vmatpush1.msra.mxu0 0.0
        %1067 = vmatprep.subr.mxu0 0.0
        %1068 = vmatpush1.msra.mxu0 0.0
        %1069 = vmatprep.subr.mxu0 0.0
        %1070 = vmatpush1.msra.mxu0 0.0
        %1071 = vmatprep.subr.mxu0 0.0
        %1072 = vmatpush1.msra.mxu0 0.0
        %1073 = vmatprep.subr.mxu0 0.0
        %1074 = vmatpush1.msra.mxu0 0.0
        %1075 = vmatprep.subr.mxu0 0.0
        %1076 = vmatpush1.msra.mxu0 0.0
        %1077 = vmatprep.subr.mxu0 0.0
        %1078 = vmatpush1.msra.mxu0 0.0
        %1079 = vmatprep.subr.mxu0 0.0
        %1080 = vmatpush1.msra.mxu0 0.0
        %1081 = vmatprep.subr.mxu0 0.0
        %1082 = vmatpush1.msra.mxu0 0.0
        %1083 = vmatprep.subr.mxu0 0.0
        %1084 = vmatpush1.msra.mxu0 0.0
        %1085 = vmatprep.subr.mxu0 0.0
        %1086 = vmatpush1.msra.mxu0 0.0
        %1087 = vmatprep.subr.mxu0 0.0
        %1088 = vmatpush1.msra.mxu0 0.0
        %1089 = vmatprep.subr.mxu0 0.0
        %1090 = vmatpush1.msra.mxu0 0.0
        %1091 = vmatprep.subr.mxu0 0.0
        %1092 = vmatpush1.msra.mxu0 0.0
        %1093 = vmatprep.subr.mxu0 0.0
        %1094 = vmatpush1.msra.mxu0 0.0
        %1095 = vmatprep.mubr.f32.mxu0 0.0
        %v1096 = vand.u32 %v714, 4294901760
        %1097 = vmatmul.mubr.f32.gmra.mrb[0].mxu0 %v1096
        %v1098 = vpop.f32.mrb[0].mxu0
        %v1099 = vadd.f32 %v1022, %v1098
        %v1100 = vpop.f32.mrb[0].mxu0
        %1101 = vdwg.mxu0
        %1102 = vmatprep.subr.mxu0 0.0
        %v1103 = vand.u32 %v712, 4294901760
        %1104 = vmatpush1.msra.mxu0 %v1103
        %1105 = vmatprep.subr.mxu0 0.0
        %v1106 = vand.u32 %v713, 4294901760
        %1107 = vmatpush1.msra.mxu0 %v1106
        %1108 = vmatprep.subr.mxu0 0.0
        %1109 = vmatpush1.msra.mxu0 0.0
        %1110 = vmatprep.subr.mxu0 0.0
        %1111 = vmatpush1.msra.mxu0 0.0
        %1112 = vmatprep.subr.mxu0 0.0
        %1113 = vmatpush1.msra.mxu0 0.0
        %1114 = vmatprep.subr.mxu0 0.0
        %1115 = vmatpush1.msra.mxu0 0.0
        %1116 = vmatprep.subr.mxu0 0.0
        %1117 = vmatpush1.msra.mxu0 0.0
        %1118 = vmatprep.subr.mxu0 0.0
        %1119 = vmatpush1.msra.mxu0 0.0
        %1120 = vmatprep.subr.mxu0 0.0
        %1121 = vmatpush1.msra.mxu0 0.0
        %1122 = vmatprep.subr.mxu0 0.0
        %1123 = vmatpush1.msra.mxu0 0.0
        %1124 = vmatprep.subr.mxu0 0.0
        %1125 = vmatpush1.msra.mxu0 0.0
        %1126 = vmatprep.subr.mxu0 0.0
        %1127 = vmatpush1.msra.mxu0 0.0
        %1128 = vmatprep.subr.mxu0 0.0
        %1129 = vmatpush1.msra.mxu0 0.0
        %1130 = vmatprep.subr.mxu0 0.0
        %1131 = vmatpush1.msra.mxu0 0.0
        %1132 = vmatprep.subr.mxu0 0.0
        %1133 = vmatpush1.msra.mxu0 0.0
        %1134 = vmatprep.subr.mxu0 0.0
        %1135 = vmatpush1.msra.mxu0 0.0
        %1136 = vmatprep.subr.mxu0 0.0
        %1137 = vmatpush1.msra.mxu0 0.0
        %1138 = vmatprep.subr.mxu0 0.0
        %1139 = vmatpush1.msra.mxu0 0.0
        %1140 = vmatprep.subr.mxu0 0.0
        %1141 = vmatpush1.msra.mxu0 0.0
        %1142 = vmatprep.subr.mxu0 0.0
        %1143 = vmatpush1.msra.mxu0 0.0
        %1144 = vmatprep.subr.mxu0 0.0
        %1145 = vmatpush1.msra.mxu0 0.0
        %1146 = vmatprep.subr.mxu0 0.0
        %1147 = vmatpush1.msra.mxu0 0.0
        %1148 = vmatprep.subr.mxu0 0.0
        %1149 = vmatpush1.msra.mxu0 0.0
        %1150 = vmatprep.subr.mxu0 0.0
        %1151 = vmatpush1.msra.mxu0 0.0
        %1152 = vmatprep.subr.mxu0 0.0
        %1153 = vmatpush1.msra.mxu0 0.0
        %1154 = vmatprep.subr.mxu0 0.0
        %1155 = vmatpush1.msra.mxu0 0.0
        %1156 = vmatprep.subr.mxu0 0.0
        %1157 = vmatpush1.msra.mxu0 0.0
        %1158 = vmatprep.subr.mxu0 0.0
        %1159 = vmatpush1.msra.mxu0 0.0
        %1160 = vmatprep.subr.mxu0 0.0
        %1161 = vmatpush1.msra.mxu0 0.0
        %1162 = vmatprep.subr.mxu0 0.0
        %1163 = vmatpush1.msra.mxu0 0.0
        %1164 = vmatprep.subr.mxu0 0.0
        %1165 = vmatpush1.msra.mxu0 0.0
        %1166 = vmatprep.subr.mxu0 0.0
        %1167 = vmatpush1.msra.mxu0 0.0
        %1168 = vmatprep.mubr.f32.mxu0 0.0
        %v1169 = vand.u32 %v714, 4294901760
        %1170 = vmatmul.mubr.f32.gmra.mrb[0].mxu0 %v1169
        %v1171 = vpop.f32.mrb[0].mxu0
        %v1172 = vadd.f32 %v1099, %v1171
        %v1173 = vpop.f32.mrb[0].mxu0
        %1174 = vdwg.mxu0
        %v1175 = vadd.f32 %v692, %v1172
        %s1176 = sadd.s32 %s199, 6
        %s1177 = sld [smem:[#allocation4 + %s1176]]
        %v1178 = vstv %s1177
        %v1179 = vsel %vm203, %v1178, 0.0
        %v1180 = vsel %vm204, %v1178, 0.0
        %v1181 = vadd.f32 %v1179, 0.0
        %v1182 = vadd.f32 %v1180, 0.0
        %s1183 = sadd.s32 %s199, 7
        %s1184 = sld [smem:[#allocation4 + %s1183]]
        %v1185 = vstv %s1184
        %v1186 = vsel %vm212, %v1185, 0.0
        %v1187 = vsel %vm213, %v1185, 0.0
        %v1188 = vadd.f32 %v1181, %v1186
        %v1189 = vadd.f32 %v1182, %v1187
        %s1190 = sadd.s32 %s199, 8
        %s1191 = sld [smem:[#allocation4 + %s1190]]
        %v1192 = vstv %s1191
        %v1193 = vsel %vm222, %v1192, 0.0
        %v1194 = vsel %vm223, %v1192, 0.0
        %v1195 = vadd.f32 %v1188, %v1193
        %v1196 = vadd.f32 %v1189, %v1194
        %v1197 = vsel %vm229, %v175, 0
        %1199 = vmatprep.subr.mxu0 0.0
        %v1200 = vand.u32 %v1195, 4294901760
        %1201 = vmatpush1.msra.mxu0 %v1200
        %1202 = vmatprep.subr.mxu0 0.0
        %v1203 = vand.u32 %v1196, 4294901760
        %1204 = vmatpush1.msra.mxu0 %v1203
        %1205 = vmatprep.subr.mxu0 0.0
        %1206 = vmatpush1.msra.mxu0 0.0
        %1207 = vmatprep.subr.mxu0 0.0
        %1208 = vmatpush1.msra.mxu0 0.0
        %1209 = vmatprep.subr.mxu0 0.0
        %1210 = vmatpush1.msra.mxu0 0.0
        %1211 = vmatprep.subr.mxu0 0.0
        %1212 = vmatpush1.msra.mxu0 0.0
        %1213 = vmatprep.subr.mxu0 0.0
        %1214 = vmatpush1.msra.mxu0 0.0
        %1215 = vmatprep.subr.mxu0 0.0
        %1216 = vmatpush1.msra.mxu0 0.0
        %1217 = vmatprep.subr.mxu0 0.0
        %1218 = vmatpush1.msra.mxu0 0.0
        %1219 = vmatprep.subr.mxu0 0.0
        %1220 = vmatpush1.msra.mxu0 0.0
        %1221 = vmatprep.subr.mxu0 0.0
        %1222 = vmatpush1.msra.mxu0 0.0
        %1223 = vmatprep.subr.mxu0 0.0
        %1224 = vmatpush1.msra.mxu0 0.0
        %1225 = vmatprep.subr.mxu0 0.0
        %1226 = vmatpush1.msra.mxu0 0.0
        %1227 = vmatprep.subr.mxu0 0.0
        %1228 = vmatpush1.msra.mxu0 0.0
        %1229 = vmatprep.subr.mxu0 0.0
        %1230 = vmatpush1.msra.mxu0 0.0
        %1231 = vmatprep.subr.mxu0 0.0
        %1232 = vmatpush1.msra.mxu0 0.0
        %1233 = vmatprep.subr.mxu0 0.0
        %1234 = vmatpush1.msra.mxu0 0.0
        %1235 = vmatprep.subr.mxu0 0.0
        %1236 = vmatpush1.msra.mxu0 0.0
        %1237 = vmatprep.subr.mxu0 0.0
        %1238 = vmatpush1.msra.mxu0 0.0
        %1239 = vmatprep.subr.mxu0 0.0
        %1240 = vmatpush1.msra.mxu0 0.0
        %1241 = vmatprep.subr.mxu0 0.0
        %1242 = vmatpush1.msra.mxu0 0.0
        %1243 = vmatprep.subr.mxu0 0.0
        %1244 = vmatpush1.msra.mxu0 0.0
        %1245 = vmatprep.subr.mxu0 0.0
        %1246 = vmatpush1.msra.mxu0 0.0
        %1247 = vmatprep.subr.mxu0 0.0
        %1248 = vmatpush1.msra.mxu0 0.0
        %1249 = vmatprep.subr.mxu0 0.0
        %1250 = vmatpush1.msra.mxu0 0.0
        %1251 = vmatprep.subr.mxu0 0.0
        %1252 = vmatpush1.msra.mxu0 0.0
        %1253 = vmatprep.subr.mxu0 0.0
        %1254 = vmatpush1.msra.mxu0 0.0
        %1255 = vmatprep.subr.mxu0 0.0
        %1256 = vmatpush1.msra.mxu0 0.0
        %1257 = vmatprep.subr.mxu0 0.0
        %1258 = vmatpush1.msra.mxu0 0.0
        %1259 = vmatprep.subr.mxu0 0.0
        %1260 = vmatpush1.msra.mxu0 0.0
        %1261 = vmatprep.subr.mxu0 0.0
        %1262 = vmatpush1.msra.mxu0 0.0
        %1263 = vmatprep.subr.mxu0 0.0
        %1264 = vmatpush1.msra.mxu0 0.0
        %1265 = vmatprep.mubr.f32.mxu0 0.0
        %v1266 = vand.u32 %v1197, 4294901760
        %v1267 = vsub.f32 %v1197, %v1266
        %v1268 = vand.u32 %v1267, 4294901760
        %v1269 = vsub.f32 %v1267, %v1268
        %v1270 = vand.u32 %v1269, 4294901760
        %1271 = vmatmul.mubr.f32.gmra.mrb[0].mxu0 %v1270
        %v1272 = vpop.f32.mrb[0].mxu0
        %v1273 = vadd.f32 0.0, %v1272
        %v1274 = vpop.f32.mrb[0].mxu0
        %1275 = vdwg.mxu0
        %1276 = vmatprep.subr.mxu0 0.0
        %v1277 = vand.u32 %v1195, 4294901760
        %v1278 = vsub.f32 %v1195, %v1277
        %v1279 = vand.u32 %v1278, 4294901760
        %v1280 = vsub.f32 %v1278, %v1279
        %v1281 = vand.u32 %v1280, 4294901760
        %1282 = vmatpush1.msra.mxu0 %v1281
        %1283 = vmatprep.subr.mxu0 0.0
        %v1284 = vand.u32 %v1196, 4294901760
        %v1285 = vsub.f32 %v1196, %v1284
        %v1286 = vand.u32 %v1285, 4294901760
        %v1287 = vsub.f32 %v1285, %v1286
        %v1288 = vand.u32 %v1287, 4294901760
        %1289 = vmatpush1.msra.mxu0 %v1288
        %1290 = vmatprep.subr.mxu0 0.0
        %1291 = vmatpush1.msra.mxu0 0.0
        %1292 = vmatprep.subr.mxu0 0.0
        %1293 = vmatpush1.msra.mxu0 0.0
        %1294 = vmatprep.subr.mxu0 0.0
        %1295 = vmatpush1.msra.mxu0 0.0
        %1296 = vmatprep.subr.mxu0 0.0
        %1297 = vmatpush1.msra.mxu0 0.0
        %1298 = vmatprep.subr.mxu0 0.0
        %1299 = vmatpush1.msra.mxu0 0.0
        %1300 = vmatprep.subr.mxu0 0.0
        %1301 = vmatpush1.msra.mxu0 0.0
        %1302 = vmatprep.subr.mxu0 0.0
        %1303 = vmatpush1.msra.mxu0 0.0
        %1304 = vmatprep.subr.mxu0 0.0
        %1305 = vmatpush1.msra.mxu0 0.0
        %1306 = vmatprep.subr.mxu0 0.0
        %1307 = vmatpush1.msra.mxu0 0.0
        %1308 = vmatprep.subr.mxu0 0.0
        %1309 = vmatpush1.msra.mxu0 0.0
        %1310 = vmatprep.subr.mxu0 0.0
        %1311 = vmatpush1.msra.mxu0 0.0
        %1312 = vmatprep.subr.mxu0 0.0
        %1313 = vmatpush1.msra.mxu0 0.0
        %1314 = vmatprep.subr.mxu0 0.0
        %1315 = vmatpush1.msra.mxu0 0.0
        %1316 = vmatprep.subr.mxu0 0.0
        %1317 = vmatpush1.msra.mxu0 0.0
        %1318 = vmatprep.subr.mxu0 0.0
        %1319 = vmatpush1.msra.mxu0 0.0
        %1320 = vmatprep.subr.mxu0 0.0
        %1321 = vmatpush1.msra.mxu0 0.0
        %1322 = vmatprep.subr.mxu0 0.0
        %1323 = vmatpush1.msra.mxu0 0.0
        %1324 = vmatprep.subr.mxu0 0.0
        %1325 = vmatpush1.msra.mxu0 0.0
        %1326 = vmatprep.subr.mxu0 0.0
        %1327 = vmatpush1.msra.mxu0 0.0
        %1328 = vmatprep.subr.mxu0 0.0
        %1329 = vmatpush1.msra.mxu0 0.0
        %1330 = vmatprep.subr.mxu0 0.0
        %1331 = vmatpush1.msra.mxu0 0.0
        %1332 = vmatprep.subr.mxu0 0.0
        %1333 = vmatpush1.msra.mxu0 0.0
        %1334 = vmatprep.subr.mxu0 0.0
        %1335 = vmatpush1.msra.mxu0 0.0
        %1336 = vmatprep.subr.mxu0 0.0
        %1337 = vmatpush1.msra.mxu0 0.0
        %1338 = vmatprep.subr.mxu0 0.0
        %1339 = vmatpush1.msra.mxu0 0.0
        %1340 = vmatprep.subr.mxu0 0.0
        %1341 = vmatpush1.msra.mxu0 0.0
        %1342 = vmatprep.subr.mxu0 0.0
        %1343 = vmatpush1.msra.mxu0 0.0
        %1344 = vmatprep.subr.mxu0 0.0
        %1345 = vmatpush1.msra.mxu0 0.0
        %1346 = vmatprep.subr.mxu0 0.0
        %1347 = vmatpush1.msra.mxu0 0.0
        %1348 = vmatprep.subr.mxu0 0.0
        %1349 = vmatpush1.msra.mxu0 0.0
        %1350 = vmatprep.mubr.f32.mxu0 0.0
        %v1351 = vand.u32 %v1197, 4294901760
        %1352 = vmatmul.mubr.f32.gmra.mrb[0].mxu0 %v1351
        %v1353 = vpop.f32.mrb[0].mxu0
        %v1354 = vadd.f32 %v1273, %v1353
        %v1355 = vpop.f32.mrb[0].mxu0
        %1356 = vdwg.mxu0
        %1357 = vmatprep.subr.mxu0 0.0
        %v1358 = vand.u32 %v1195, 4294901760
        %v1359 = vsub.f32 %v1195, %v1358
        %1360 = vmatpush1.msra.mxu0 %v1359
        %1361 = vmatprep.subr.mxu0 0.0
        %v1362 = vand.u32 %v1196, 4294901760
        %v1363 = vsub.f32 %v1196, %v1362
        %1364 = vmatpush1.msra.mxu0 %v1363
        %1365 = vmatprep.subr.mxu0 0.0
        %1366 = vmatpush1.msra.mxu0 0.0
        %1367 = vmatprep.subr.mxu0 0.0
        %1368 = vmatpush1.msra.mxu0 0.0
        %1369 = vmatprep.subr.mxu0 0.0
        %1370 = vmatpush1.msra.mxu0 0.0
        %1371 = vmatprep.subr.mxu0 0.0
        %1372 = vmatpush1.msra.mxu0 0.0
        %1373 = vmatprep.subr.mxu0 0.0
        %1374 = vmatpush1.msra.mxu0 0.0
        %1375 = vmatprep.subr.mxu0 0.0
        %1376 = vmatpush1.msra.mxu0 0.0
        %1377 = vmatprep.subr.mxu0 0.0
        %1378 = vmatpush1.msra.mxu0 0.0
        %1379 = vmatprep.subr.mxu0 0.0
        %1380 = vmatpush1.msra.mxu0 0.0
        %1381 = vmatprep.subr.mxu0 0.0
        %1382 = vmatpush1.msra.mxu0 0.0
        %1383 = vmatprep.subr.mxu0 0.0
        %1384 = vmatpush1.msra.mxu0 0.0
        %1385 = vmatprep.subr.mxu0 0.0
        %1386 = vmatpush1.msra.mxu0 0.0
        %1387 = vmatprep.subr.mxu0 0.0
        %1388 = vmatpush1.msra.mxu0 0.0
        %1389 = vmatprep.subr.mxu0 0.0
        %1390 = vmatpush1.msra.mxu0 0.0
        %1391 = vmatprep.subr.mxu0 0.0
        %1392 = vmatpush1.msra.mxu0 0.0
        %1393 = vmatprep.subr.mxu0 0.0
        %1394 = vmatpush1.msra.mxu0 0.0
        %1395 = vmatprep.subr.mxu0 0.0
        %1396 = vmatpush1.msra.mxu0 0.0
        %1397 = vmatprep.subr.mxu0 0.0
        %1398 = vmatpush1.msra.mxu0 0.0
        %1399 = vmatprep.subr.mxu0 0.0
        %1400 = vmatpush1.msra.mxu0 0.0
        %1401 = vmatprep.subr.mxu0 0.0
        %1402 = vmatpush1.msra.mxu0 0.0
        %1403 = vmatprep.subr.mxu0 0.0
        %1404 = vmatpush1.msra.mxu0 0.0
        %1405 = vmatprep.subr.mxu0 0.0
        %1406 = vmatpush1.msra.mxu0 0.0
        %1407 = vmatprep.subr.mxu0 0.0
        %1408 = vmatpush1.msra.mxu0 0.0
        %1409 = vmatprep.subr.mxu0 0.0
        %1410 = vmatpush1.msra.mxu0 0.0
        %1411 = vmatprep.subr.mxu0 0.0
        %1412 = vmatpush1.msra.mxu0 0.0
        %1413 = vmatprep.subr.mxu0 0.0
        %1414 = vmatpush1.msra.mxu0 0.0
        %1415 = vmatprep.subr.mxu0 0.0
        %1416 = vmatpush1.msra.mxu0 0.0
        %1417 = vmatprep.subr.mxu0 0.0
        %1418 = vmatpush1.msra.mxu0 0.0
        %1419 = vmatprep.subr.mxu0 0.0
        %1420 = vmatpush1.msra.mxu0 0.0
        %1421 = vmatprep.subr.mxu0 0.0
        %1422 = vmatpush1.msra.mxu0 0.0
        %1423 = vmatprep.subr.mxu0 0.0
        %1424 = vmatpush1.msra.mxu0 0.0
        %1425 = vmatprep.mubr.f32.mxu0 0.0
        %v1426 = vand.u32 %v1197, 4294901760
        %v1427 = vsub.f32 %v1197, %v1426
        %1428 = vmatmul.mubr.f32.gmra.mrb[0].mxu0 %v1427
        %v1429 = vpop.f32.mrb[0].mxu0
        %v1430 = vadd.f32 %v1354, %v1429
        %v1431 = vpop.f32.mrb[0].mxu0
        %1432 = vdwg.mxu0
        %1433 = vmatprep.subr.mxu0 0.0
        %v1434 = vand.u32 %v1195, 4294901760
        %1435 = vmatpush1.msra.mxu0 %v1434
        %1436 = vmatprep.subr.mxu0 0.0
        %v1437 = vand.u32 %v1196, 4294901760
        %1438 = vmatpush1.msra.mxu0 %v1437
        %1439 = vmatprep.subr.mxu0 0.0
        %1440 = vmatpush1.msra.mxu0 0.0
        %1441 = vmatprep.subr.mxu0 0.0
        %1442 = vmatpush1.msra.mxu0 0.0
        %1443 = vmatprep.subr.mxu0 0.0
        %1444 = vmatpush1.msra.mxu0 0.0
        %1445 = vmatprep.subr.mxu0 0.0
        %1446 = vmatpush1.msra.mxu0 0.0
        %1447 = vmatprep.subr.mxu0 0.0
        %1448 = vmatpush1.msra.mxu0 0.0
        %1449 = vmatprep.subr.mxu0 0.0
        %1450 = vmatpush1.msra.mxu0 0.0
        %1451 = vmatprep.subr.mxu0 0.0
        %1452 = vmatpush1.msra.mxu0 0.0
        %1453 = vmatprep.subr.mxu0 0.0
        %1454 = vmatpush1.msra.mxu0 0.0
        %1455 = vmatprep.subr.mxu0 0.0
        %1456 = vmatpush1.msra.mxu0 0.0
        %1457 = vmatprep.subr.mxu0 0.0
        %1458 = vmatpush1.msra.mxu0 0.0
        %1459 = vmatprep.subr.mxu0 0.0
        %1460 = vmatpush1.msra.mxu0 0.0
        %1461 = vmatprep.subr.mxu0 0.0
        %1462 = vmatpush1.msra.mxu0 0.0
        %1463 = vmatprep.subr.mxu0 0.0
        %1464 = vmatpush1.msra.mxu0 0.0
        %1465 = vmatprep.subr.mxu0 0.0
        %1466 = vmatpush1.msra.mxu0 0.0
        %1467 = vmatprep.subr.mxu0 0.0
        %1468 = vmatpush1.msra.mxu0 0.0
        %1469 = vmatprep.subr.mxu0 0.0
        %1470 = vmatpush1.msra.mxu0 0.0
        %1471 = vmatprep.subr.mxu0 0.0
        %1472 = vmatpush1.msra.mxu0 0.0
        %1473 = vmatprep.subr.mxu0 0.0
        %1474 = vmatpush1.msra.mxu0 0.0
        %1475 = vmatprep.subr.mxu0 0.0
        %1476 = vmatpush1.msra.mxu0 0.0
        %1477 = vmatprep.subr.mxu0 0.0
        %1478 = vmatpush1.msra.mxu0 0.0
        %1479 = vmatprep.subr.mxu0 0.0
        %1480 = vmatpush1.msra.mxu0 0.0
        %1481 = vmatprep.subr.mxu0 0.0
        %1482 = vmatpush1.msra.mxu0 0.0
        %1483 = vmatprep.subr.mxu0 0.0
        %1484 = vmatpush1.msra.mxu0 0.0
        %1485 = vmatprep.subr.mxu0 0.0
        %1486 = vmatpush1.msra.mxu0 0.0
        %1487 = vmatprep.subr.mxu0 0.0
        %1488 = vmatpush1.msra.mxu0 0.0
        %1489 = vmatprep.subr.mxu0 0.0
        %1490 = vmatpush1.msra.mxu0 0.0
        %1491 = vmatprep.subr.mxu0 0.0
        %1492 = vmatpush1.msra.mxu0 0.0
        %1493 = vmatprep.subr.mxu0 0.0
        %1494 = vmatpush1.msra.mxu0 0.0
        %1495 = vmatprep.subr.mxu0 0.0
        %1496 = vmatpush1.msra.mxu0 0.0
        %1497 = vmatprep.subr.mxu0 0.0
        %1498 = vmatpush1.msra.mxu0 0.0
        %1499 = vmatprep.mubr.f32.mxu0 0.0
        %v1500 = vand.u32 %v1197, 4294901760
        %v1501 = vsub.f32 %v1197, %v1500
        %v1502 = vand.u32 %v1501, 4294901760
        %1503 = vmatmul.mubr.f32.gmra.mrb[0].mxu0 %v1502
        %v1504 = vpop.f32.mrb[0].mxu0
        %v1505 = vadd.f32 %v1430, %v1504
        %v1506 = vpop.f32.mrb[0].mxu0
        %1507 = vdwg.mxu0
        %1508 = vmatprep.subr.mxu0 0.0
        %v1509 = vand.u32 %v1195, 4294901760
        %v1510 = vsub.f32 %v1195, %v1509
        %v1511 = vand.u32 %v1510, 4294901760
        %1512 = vmatpush1.msra.mxu0 %v1511
        %1513 = vmatprep.subr.mxu0 0.0
        %v1514 = vand.u32 %v1196, 4294901760
        %v1515 = vsub.f32 %v1196, %v1514
        %v1516 = vand.u32 %v1515, 4294901760
        %1517 = vmatpush1.msra.mxu0 %v1516
        %1518 = vmatprep.subr.mxu0 0.0
        %1519 = vmatpush1.msra.mxu0 0.0
        %1520 = vmatprep.subr.mxu0 0.0
        %1521 = vmatpush1.msra.mxu0 0.0
        %1522 = vmatprep.subr.mxu0 0.0
        %1523 = vmatpush1.msra.mxu0 0.0
        %1524 = vmatprep.subr.mxu0 0.0
        %1525 = vmatpush1.msra.mxu0 0.0
        %1526 = vmatprep.subr.mxu0 0.0
        %1527 = vmatpush1.msra.mxu0 0.0
        %1528 = vmatprep.subr.mxu0 0.0
        %1529 = vmatpush1.msra.mxu0 0.0
        %1530 = vmatprep.subr.mxu0 0.0
        %1531 = vmatpush1.msra.mxu0 0.0
        %1532 = vmatprep.subr.mxu0 0.0
        %1533 = vmatpush1.msra.mxu0 0.0
        %1534 = vmatprep.subr.mxu0 0.0
        %1535 = vmatpush1.msra.mxu0 0.0
        %1536 = vmatprep.subr.mxu0 0.0
        %1537 = vmatpush1.msra.mxu0 0.0
        %1538 = vmatprep.subr.mxu0 0.0
        %1539 = vmatpush1.msra.mxu0 0.0
        %1540 = vmatprep.subr.mxu0 0.0
        %1541 = vmatpush1.msra.mxu0 0.0
        %1542 = vmatprep.subr.mxu0 0.0
        %1543 = vmatpush1.msra.mxu0 0.0
        %1544 = vmatprep.subr.mxu0 0.0
        %1545 = vmatpush1.msra.mxu0 0.0
        %1546 = vmatprep.subr.mxu0 0.0
        %1547 = vmatpush1.msra.mxu0 0.0
        %1548 = vmatprep.subr.mxu0 0.0
        %1549 = vmatpush1.msra.mxu0 0.0
        %1550 = vmatprep.subr.mxu0 0.0
        %1551 = vmatpush1.msra.mxu0 0.0
        %1552 = vmatprep.subr.mxu0 0.0
        %1553 = vmatpush1.msra.mxu0 0.0
        %1554 = vmatprep.subr.mxu0 0.0
        %1555 = vmatpush1.msra.mxu0 0.0
        %1556 = vmatprep.subr.mxu0 0.0
        %1557 = vmatpush1.msra.mxu0 0.0
        %1558 = vmatprep.subr.mxu0 0.0
        %1559 = vmatpush1.msra.mxu0 0.0
        %1560 = vmatprep.subr.mxu0 0.0
        %1561 = vmatpush1.msra.mxu0 0.0
        %1562 = vmatprep.subr.mxu0 0.0
        %1563 = vmatpush1.msra.mxu0 0.0
        %1564 = vmatprep.subr.mxu0 0.0
        %1565 = vmatpush1.msra.mxu0 0.0
        %1566 = vmatprep.subr.mxu0 0.0
        %1567 = vmatpush1.msra.mxu0 0.0
        %1568 = vmatprep.subr.mxu0 0.0
        %1569 = vmatpush1.msra.mxu0 0.0
        %1570 = vmatprep.subr.mxu0 0.0
        %1571 = vmatpush1.msra.mxu0 0.0
        %1572 = vmatprep.subr.mxu0 0.0
        %1573 = vmatpush1.msra.mxu0 0.0
        %1574 = vmatprep.subr.mxu0 0.0
        %1575 = vmatpush1.msra.mxu0 0.0
        %1576 = vmatprep.subr.mxu0 0.0
        %1577 = vmatpush1.msra.mxu0 0.0
        %1578 = vmatprep.mubr.f32.mxu0 0.0
        %v1579 = vand.u32 %v1197, 4294901760
        %1580 = vmatmul.mubr.f32.gmra.mrb[0].mxu0 %v1579
        %v1581 = vpop.f32.mrb[0].mxu0
        %v1582 = vadd.f32 %v1505, %v1581
        %v1583 = vpop.f32.mrb[0].mxu0
        %1584 = vdwg.mxu0
        %1585 = vmatprep.subr.mxu0 0.0
        %v1586 = vand.u32 %v1195, 4294901760
        %1587 = vmatpush1.msra.mxu0 %v1586
        %1588 = vmatprep.subr.mxu0 0.0
        %v1589 = vand.u32 %v1196, 4294901760
        %1590 = vmatpush1.msra.mxu0 %v1589
        %1591 = vmatprep.subr.mxu0 0.0
        %1592 = vmatpush1.msra.mxu0 0.0
        %1593 = vmatprep.subr.mxu0 0.0
        %1594 = vmatpush1.msra.mxu0 0.0
        %1595 = vmatprep.subr.mxu0 0.0
        %1596 = vmatpush1.msra.mxu0 0.0
        %1597 = vmatprep.subr.mxu0 0.0
        %1598 = vmatpush1.msra.mxu0 0.0
        %1599 = vmatprep.subr.mxu0 0.0
        %1600 = vmatpush1.msra.mxu0 0.0
        %1601 = vmatprep.subr.mxu0 0.0
        %1602 = vmatpush1.msra.mxu0 0.0
        %1603 = vmatprep.subr.mxu0 0.0
        %1604 = vmatpush1.msra.mxu0 0.0
        %1605 = vmatprep.subr.mxu0 0.0
        %1606 = vmatpush1.msra.mxu0 0.0
        %1607 = vmatprep.subr.mxu0 0.0
        %1608 = vmatpush1.msra.mxu0 0.0
        %1609 = vmatprep.subr.mxu0 0.0
        %1610 = vmatpush1.msra.mxu0 0.0
        %1611 = vmatprep.subr.mxu0 0.0
        %1612 = vmatpush1.msra.mxu0 0.0
        %1613 = vmatprep.subr.mxu0 0.0
        %1614 = vmatpush1.msra.mxu0 0.0
        %1615 = vmatprep.subr.mxu0 0.0
        %1616 = vmatpush1.msra.mxu0 0.0
        %1617 = vmatprep.subr.mxu0 0.0
        %1618 = vmatpush1.msra.mxu0 0.0
        %1619 = vmatprep.subr.mxu0 0.0
        %1620 = vmatpush1.msra.mxu0 0.0
        %1621 = vmatprep.subr.mxu0 0.0
        %1622 = vmatpush1.msra.mxu0 0.0
        %1623 = vmatprep.subr.mxu0 0.0
        %1624 = vmatpush1.msra.mxu0 0.0
        %1625 = vmatprep.subr.mxu0 0.0
        %1626 = vmatpush1.msra.mxu0 0.0
        %1627 = vmatprep.subr.mxu0 0.0
        %1628 = vmatpush1.msra.mxu0 0.0
        %1629 = vmatprep.subr.mxu0 0.0
        %1630 = vmatpush1.msra.mxu0 0.0
        %1631 = vmatprep.subr.mxu0 0.0
        %1632 = vmatpush1.msra.mxu0 0.0
        %1633 = vmatprep.subr.mxu0 0.0
        %1634 = vmatpush1.msra.mxu0 0.0
        %1635 = vmatprep.subr.mxu0 0.0
        %1636 = vmatpush1.msra.mxu0 0.0
        %1637 = vmatprep.subr.mxu0 0.0
        %1638 = vmatpush1.msra.mxu0 0.0
        %1639 = vmatprep.subr.mxu0 0.0
        %1640 = vmatpush1.msra.mxu0 0.0
        %1641 = vmatprep.subr.mxu0 0.0
        %1642 = vmatpush1.msra.mxu0 0.0
        %1643 = vmatprep.subr.mxu0 0.0
        %1644 = vmatpush1.msra.mxu0 0.0
        %1645 = vmatprep.subr.mxu0 0.0
        %1646 = vmatpush1.msra.mxu0 0.0
        %1647 = vmatprep.subr.mxu0 0.0
        %1648 = vmatpush1.msra.mxu0 0.0
        %1649 = vmatprep.subr.mxu0 0.0
        %1650 = vmatpush1.msra.mxu0 0.0
        %1651 = vmatprep.mubr.f32.mxu0 0.0
        %v1652 = vand.u32 %v1197, 4294901760
        %1653 = vmatmul.mubr.f32.gmra.mrb[0].mxu0 %v1652
        %v1654 = vpop.f32.mrb[0].mxu0
        %v1655 = vadd.f32 %v1582, %v1654
        %v1656 = vpop.f32.mrb[0].mxu0
        %1657 = vdwg.mxu0
        %v1658 = vadd.f32 %v1175, %v1655
        %vm1659 = vcmask 64512
        %1660 = vst.msk [vmem:[%s171] sm:$0xff] %vm1659, %v1658
        %vm1661 = vcmask 130055
        %1662 = vst.msk [vmem:[#allocation2 - $0x7] sm:$0x80] %vm1661, %v175
        %s1663 = sand.u32 %s89, 1
        %s1664 = scalar_lea.sflag [#allocation8], %s1663
        %s1665 = sand.u32 %s89, 1
        %s1666 = smul.addr %s1665, 8
        %s1667 = scalar_lea.vmem [#allocation9], %s1666
        // Predicated region
        $region29: #{tpu_custom_call.1} parent=23 // pred_check
          %p1668 = pneg %p99
        $region30: #{tpu_custom_call.1} parent=23 // pred_check_branch
          %1670 = sbr.rel (%p1668) target = $region32
        $region31: #{tpu_custom_call.1} parent=23 // pred_region
          %s1672 = ssub.s32 128, 128
          %1673 = vsyncadd %s1664, %s1672
          %s1674 = sadd.s32 %s35, %s34
          %s1675 = smul.addr %s33, 4
          %s1676 = sadd.s32 %s1674, %s1675
          %s1677 = smul.addr %s1676, 128
          %s1678 = scalar_lea.hbm %s3, %s1677
          %s1680 = sshll.u32 %s1667, 4
          %s1681 = int_to_ptr.vmem [resolvable:$true] %s1680
          %1683 = dma.vmem_to_hbm [thread:$0]  %s1681, 128, %s1678, %s1664
        $region32: #{tpu_custom_call.1} parent=23 // pred_fallthru
          _
      $region24: #{tpu_custom_call.1} parent=5 // pred_fallthru
        _
      %p1684 = scmp.le.s32.totalorder 2, %s23
      // Predicated region
      $region33: #{tpu_custom_call.1} parent=5 // pred_check
        %p1685 = pneg %p1684
      $region34: #{tpu_custom_call.1} parent=5 // pred_check_branch
        %1687 = sbr.rel (%p1685) target = $region36
      $region35: #{tpu_custom_call.1} parent=5 // pred_region
        %s1688 = ssub.s32 %s23, 2
        // Predicated region
        $region37: #{tpu_custom_call.1} parent=35 // pred_check
          %p1689 = pneg %p105
        $region38: #{tpu_custom_call.1} parent=35 // pred_check_branch
          %1691 = sbr.rel (%p1689) target = $region40
        $region39: #{tpu_custom_call.1} parent=35 // pred_region
          %s1692 = sand.u32 %s90, 1
          %s1693 = scalar_lea.sflag [#allocation8], %s1692
          %s1694 = sand.u32 %s90, 1
          %s1695 = smul.addr %s1694, 8
          %s1696 = scalar_lea.vmem [#allocation9], %s1695
          %1697 = dma.done %s1693, 128
        $region40: #{tpu_custom_call.1} parent=35 // pred_fallthru
          _
      $region36: #{tpu_custom_call.1} parent=5 // pred_fallthru
        _
    $region6: #{tpu_custom_call.1} parent=1 // loop_footer
      %s27 = sadd.s32 1, %s23
    $region7: #{tpu_custom_call.1} parent=1 // loop_footer_branch
      %22 = sbr.rel target = $region3
    $region8: #{tpu_custom_call.1} parent=1 // loop_exit
      _
    %1698 = vsyncpa [#allocation7], 1
    %s1699 = scalar_lea.sflag [#allocation7], 1
    %1700 = vsyncpa %s1699, 1
    %1701 = vsyncpa [#allocation8], 1
    %s1702 = scalar_lea.sflag [#allocation8], 1
    %1703 = vsyncpa %s1702, 1

</llo_original>
